<compile_context>
chip_gen: v5e
topology: v5e:2x2
jax: 0.10.0
libtpu: 0.0.40
codegen_flags: <defaults>
</compile_context>

<pallas_src>
import functools

import jax
import jax.numpy as jnp
from jax import lax
from jax.experimental import pallas as pl
from jax.experimental.pallas import tpu as pltpu


# ---------------------------------------------------------------------------
# Fused PDQP layer kernel: X-update + Y-update for one block of batches.
# ---------------------------------------------------------------------------
def pdqp_layer_kernel(scal_ref, x_ref, xbar_ref, yb_ref, q_ref, a_ref,
                      c_ref, l_ref, u_ref, wkx_ref, ws_ref,
                      xnew_ref, xbarnew_ref, ynew_ref, *, inv_nd):
    s = scal_ref[...]                       # (Bb, 4, 1), sigmoid applied in wrapper
    eta = s[:, 0:1, :]                      # (Bb, 1, 1)
    beta = s[:, 1:2, :]
    tau = s[:, 2:3, :]
    theta = s[:, 3:4, :]

    x = x_ref[...]                          # (Bb, n, d)
    xbar = xbar_ref[...]                    # (Bb, n, d)

    # ---- X half-layer -----------------------------------------------------
    x_m = (1.0 - beta) * xbar + beta * x
    qxm = jnp.einsum("bij,bjd->bid", q_ref[...], x_m,
                     preferred_element_type=jnp.float32)        # (Bb, n, d)  MXU
    qxmw = jnp.einsum("bnd,bde->bne", qxm, wkx_ref[...],
                      preferred_element_type=jnp.float32)       # (Bb, n, d)  MXU
    x_new = x - eta * (qxmw + c_ref[...]) * inv_nd              # c: (Bb, n, 1)
    x_new = jnp.clip(x_new, l_ref[...], u_ref[...])             # l/u: (Bb, n, 1)
    xbar_new = (1.0 - beta) * xbar + beta * x_new
    xnew_ref[...] = x_new.astype(xnew_ref.dtype)
    xbarnew_ref[...] = xbar_new.astype(xbarnew_ref.dtype)

    # ---- Y half-layer -----------------------------------------------------
    x_tmp = theta * (x_new - x) + x_new
    axt = jnp.einsum("bmn,bnd->bmd", a_ref[...], x_tmp,
                     preferred_element_type=jnp.float32)        # (Bb, m, d)  MXU
    axtw = jnp.einsum("bmd,bde->bme", axt, ws_ref[...],
                      preferred_element_type=jnp.float32)       # (Bb, m, d)  MXU
    # Yb = Y + tau * b[..., None] is folded in the wrapper (drops the
    # lane-width-1 b input stream); epilogue is relu(Yb - tau * A@X_tmp@Ws).
    ynew_ref[...] = jnp.maximum(yb_ref[...] - tau * axtw, 0.0).astype(ynew_ref.dtype)


def pdqp_layer_pallas(X, X_bar, Y, Q, A, c, b, l, u,
                      eta, beta, tau, theta, Wkx, Ws, *, batch_block=None):
    """One fused PDQP_Layer_2_full step (X- and Y-updates) via Pallas."""
    bs, n, d = X.shape
    m = A.shape[1]
    # The module's broadcasting (X - ..., Y + ...) implies in_size == out_size.
    assert Wkx.shape == (bs, d, d) and Ws.shape == (bs, d, d), \
        "PDQP layer requires in_size == out_size"
    Bb = bs if batch_block is None else batch_block
    assert bs % Bb == 0, "batch_block must divide batch size"
    inv_nd = 1.0 / float(n * d)

    # Param prep (one fused XLA op each).
    scal = jnp.stack([eta, beta, tau, theta], axis=1)[..., None]   # (bs, 4, 1)
    Yb = Y + tau[:, None, None] * b[:, :, None]                    # (bs, m, d)
    c3 = c[:, :, None]
    l3 = l[:, :, None]
    u3 = u[:, :, None]

    flops = 2 * bs * (n * n * d + n * d * d + m * n * d + m * d * d)
    in_sizes = (scal.size + X.size + X_bar.size + Yb.size + Q.size + A.size
                + c3.size + l3.size + u3.size + Wkx.size + Ws.size)
    out_sizes = 2 * X.size + Yb.size
    bytes_accessed = 4 * (in_sizes + out_sizes)

    def blk3(s1, s2):
        return pl.BlockSpec((Bb, s1, s2), lambda i: (i, 0, 0))

    kernel = functools.partial(pdqp_layer_kernel, inv_nd=inv_nd)

    X_new, X_bar_new, Y_new = pl.pallas_call(
        kernel,
        out_shape=(
            jax.ShapeDtypeStruct((bs, n, d), jnp.float32),
            jax.ShapeDtypeStruct((bs, n, d), jnp.float32),
            jax.ShapeDtypeStruct((bs, m, d), jnp.float32),
        ),
        grid=(bs // Bb,),
        in_specs=[
            blk3(4, 1),    # [eta, beta, tau, theta] per batch
            blk3(n, d),    # X
            blk3(n, d),    # X_bar
            blk3(m, d),    # Yb = Y + tau * b[..., None]
            blk3(n, n),    # Q
            blk3(m, n),    # A
            blk3(n, 1),    # c
            blk3(n, 1),    # l
            blk3(n, 1),    # u
            blk3(d, d),    # Wkx (softmaxed, per batch)
            blk3(d, d),    # Ws  (softmaxed, per batch)
        ],
        out_specs=(
            blk3(n, d),    # X_new
            blk3(n, d),    # X_bar_new
            blk3(m, d),    # Y_new
        ),
        compiler_params=pltpu.CompilerParams(
            dimension_semantics=("parallel",)),
        cost_estimate=pl.CostEstimate(
            flops=flops, transcendentals=0, bytes_accessed=bytes_accessed),
    )(scal, X, X_bar, Yb, Q, A, c3, l3, u3, Wkx, Ws)
    return X_new, X_bar_new, Y_new


# ---------------------------------------------------------------------------
# Pure-JAX reference for one PDQP layer (mirrors the PyTorch forward exactly).
# ---------------------------------------------------------------------------
def pdqp_layer_ref(X, X_bar, Y, Q, A, c, b, l, u, eta, beta, tau, theta, Wkx, Ws):
    n_x, d_in = X.shape[-2], X.shape[-1]
    eta3, beta3 = eta[:, None, None], beta[:, None, None]
    tau3, th3 = tau[:, None, None], theta[:, None, None]
    hi = lax.Precision.HIGHEST

    X_m = (1.0 - beta3) * X_bar + beta3 * X
    QXm = jnp.einsum("bij,bjd->bid", Q, X_m, precision=hi)
    QXmW = jnp.einsum("bnd,bde->bne", QXm, Wkx, precision=hi)
    X_new = X - eta3 * (QXmW + c[..., None]) / (n_x * d_in)
    X_new = jnp.clip(X_new, l[..., None], u[..., None])
    X_bar_new = (1.0 - beta3) * X_bar + beta3 * X_new

    X_tmp = th3 * (X_new - X) + X_new
    AX = jnp.einsum("bmn,bnd->bmd", A, X_tmp, precision=hi)
    AXW = jnp.einsum("bmd,bde->bme", AX, Ws, precision=hi)
    Y_new = jax.nn.relu(Y + tau3 * (b[..., None] - AXW))
    return X_new, X_bar_new, Y_new


# ---------------------------------------------------------------------------
# Hyper-network (ResNet) + full PDQP_Net_2_full forward.
# ---------------------------------------------------------------------------
def resnet_forward(t, p):
    # ResNet in the module ends up with use_dropout=False (kwargs key mismatch),
    # biases on input/hidden layers, no bias on the output layer.
    h = jax.nn.relu(t @ p["w_in"].T + p["b_in"])
    for i in range(p["w_h"].shape[0]):
        h = h + jax.nn.relu(h @ p["w_h"][i].T + p["b_h"][i])
    return h @ p["w_out"].T


def pdqp_net_forward(x, y, Q, A, c, b, l, u, theta_in, resnet_params,
                     feat_sizes, batch_block=None, use_pallas=True):
    params = resnet_forward(theta_in, resnet_params)             # (bs, n_params)
    E = feat_sizes[0]
    idx = 0
    var_emb = params[:, idx:idx + E][:, None, :]                 # (bs, 1, E)
    idx += E
    cons_emb = params[:, idx:idx + E][:, None, :]                # (bs, 1, E)
    idx += E

    x_incre = x[:, :, None] * var_emb                            # (bs, n, E)
    X = x[:, :, None] + x_incre
    X_bar = X
    Y = y[:, :, None] * cons_emb                                 # (bs, m, E)

    if use_pallas:
        layer_fn = functools.partial(pdqp_layer_pallas, batch_block=batch_block)
    else:
        layer_fn = pdqp_layer_ref

    for li in range(len(feat_sizes) - 1):
        d_in, d_out = feat_sizes[li], feat_sizes[li + 1]
        nw = d_in * d_out
        # X half-layer params: [eta, beta, Wkx]
        eta = jax.nn.sigmoid(params[:, idx])
        beta = jax.nn.sigmoid(params[:, idx + 1])
        Wkx = jax.nn.softmax(
            params[:, idx + 2:idx + 2 + nw].reshape(-1, d_in, d_out), axis=1)
        idx += nw + 2
        # Y half-layer params: [tau, theta, Ws]
        tau = jax.nn.sigmoid(params[:, idx])
        th = jax.nn.sigmoid(params[:, idx + 1])
        Ws = jax.nn.softmax(
            params[:, idx + 2:idx + 2 + nw].reshape(-1, d_in, d_out), axis=1)
        idx += nw + 2

        X, X_bar, Y = layer_fn(X, X_bar, Y, Q, A, c, b, l, u,
                               eta, beta, tau, th, Wkx, Ws)

    output_mod = params[:, -feat_sizes[-1]:][:, :, None]         # (bs, d_last, 1)
    x_pred = (X - x_incre).mean(-1)                              # (bs, n)
    y_pred = jnp.einsum("bmd,bdo->bmo", Y, output_mod)[..., 0]   # (bs, m)
    return x_pred, y_pred


if __name__ == "__main__":
    bs, n, m = 4, 16, 8
    feat_sizes = (32, 32, 32)     # two PDQP layers; in_size == out_size required
    u_n_params = 16
    depth = 5
    batch_block = 2               # batches per grid step (grid = bs // batch_block)

    key = jax.random.PRNGKey(0)
    ks = jax.random.split(key, 10)

    x = jax.random.normal(ks[0], (bs, n), dtype=jnp.float32)
    y = jax.random.normal(ks[1], (bs, m), dtype=jnp.float32)
    Qh = jax.random.normal(ks[2], (bs, n, n), dtype=jnp.float32) / jnp.sqrt(n)
    Q = jnp.einsum("bik,bjk->bij", Qh, Qh)                       # PSD
    A = jax.random.normal(ks[3], (bs, m, n), dtype=jnp.float32) / jnp.sqrt(n)
    c = jax.random.normal(ks[4], (bs, n), dtype=jnp.float32)
    b = jax.random.normal(ks[5], (bs, m), dtype=jnp.float32)
    l = -jnp.abs(jax.random.normal(ks[6], (bs, n), dtype=jnp.float32)) - 0.5
    u = jnp.abs(jax.random.normal(ks[7], (bs, n), dtype=jnp.float32)) + 0.5
    theta_in = jax.random.normal(ks[8], (bs, u_n_params), dtype=jnp.float32)

    # Hyper-network parameter count (matches the module's bookkeeping).
    n_params = 2 * feat_sizes[0]
    for li in range(len(feat_sizes) - 1):
        n_params += 2 * (feat_sizes[li] * feat_sizes[li + 1] + 2)
    n_params += feat_sizes[-1]

    width = u_n_params
    wk = jax.random.split(ks[9], 2 * depth + 3)
    bnd = 1.0 / float(width) ** 0.5
    uni = lambda k, shape: jax.random.uniform(k, shape, dtype=jnp.float32,
                                              minval=-bnd, maxval=bnd)
    resnet_params = {
        "w_in": uni(wk[0], (width, u_n_params)),
        "b_in": uni(wk[1], (width,)),
        "w_h": jnp.stack([uni(wk[2 + i], (width, width)) for i in range(depth)]),
        "b_h": jnp.stack([uni(wk[2 + depth + i], (width,)) for i in range(depth)]),
        "w_out": uni(wk[2 + 2 * depth], (n_params, width)),
    }

    fwd = jax.jit(functools.partial(pdqp_net_forward, feat_sizes=feat_sizes,
                                    batch_block=batch_block, use_pallas=True))
    x_pred, y_pred = fwd(x, y, Q, A, c, b, l, u, theta_in, resnet_params)
    x_pred, y_pred = jax.block_until_ready((x_pred, y_pred))

    x_ref, y_ref = pdqp_net_forward(x, y, Q, A, c, b, l, u, theta_in,
                                    resnet_params, feat_sizes=feat_sizes,
                                    use_pallas=False)

    assert x_pred.shape == (bs, n) and y_pred.shape == (bs, m)
    assert jnp.allclose(x_pred, x_ref, rtol=1e-4, atol=1e-4), "x_pred mismatch"
    assert jnp.allclose(y_pred, y_ref, rtol=1e-4, atol=1e-4), "y_pred mismatch"

    print("KERNEL_OK")
</pallas_src>

<mosaic_0001>
module attributes {stable_mosaic.version = 11 : i64} {
  func.func @pdqp_layer_kernel(%arg0: i32, %arg1: memref<2x4x1xf32, #tpu.memory_space<vmem>>, %arg2: memref<2x16x32xf32, #tpu.memory_space<vmem>>, %arg3: memref<2x16x32xf32, #tpu.memory_space<vmem>>, %arg4: memref<2x8x32xf32, #tpu.memory_space<vmem>>, %arg5: memref<2x16x16xf32, #tpu.memory_space<vmem>>, %arg6: memref<2x8x16xf32, #tpu.memory_space<vmem>>, %arg7: memref<2x16x1xf32, #tpu.memory_space<vmem>>, %arg8: memref<2x16x1xf32, #tpu.memory_space<vmem>>, %arg9: memref<2x16x1xf32, #tpu.memory_space<vmem>>, %arg10: memref<2x32x32xf32, #tpu.memory_space<vmem>>, %arg11: memref<2x32x32xf32, #tpu.memory_space<vmem>>, %arg12: memref<2x16x32xf32, #tpu.memory_space<vmem>>, %arg13: memref<2x16x32xf32, #tpu.memory_space<vmem>>, %arg14: memref<2x8x32xf32, #tpu.memory_space<vmem>>) attributes {dimension_semantics = [#tpu.dimension_semantics<parallel>], iteration_bounds = array<i64: 2>, scalar_prefetch = 0 : i64, scratch_operands = 0 : i64, tpu.core_type = #tpu.core_type<tc>, window_params = [{transform_indices = @transform_0, window_bounds = array<i64: 2, 4, 1>}, {transform_indices = @transform_1, window_bounds = array<i64: 2, 16, 32>}, {transform_indices = @transform_2, window_bounds = array<i64: 2, 16, 32>}, {transform_indices = @transform_3, window_bounds = array<i64: 2, 8, 32>}, {transform_indices = @transform_4, window_bounds = array<i64: 2, 16, 16>}, {transform_indices = @transform_5, window_bounds = array<i64: 2, 8, 16>}, {transform_indices = @transform_6, window_bounds = array<i64: 2, 16, 1>}, {transform_indices = @transform_7, window_bounds = array<i64: 2, 16, 1>}, {transform_indices = @transform_8, window_bounds = array<i64: 2, 16, 1>}, {transform_indices = @transform_9, window_bounds = array<i64: 2, 32, 32>}, {transform_indices = @transform_10, window_bounds = array<i64: 2, 32, 32>}, {transform_indices = @transform_11, window_bounds = array<i64: 2, 16, 32>}, {transform_indices = @transform_12, window_bounds = array<i64: 2, 16, 32>}, {transform_indices = @transform_13, window_bounds = array<i64: 2, 8, 32>}]} {
    %c0 = arith.constant 0 : index
    %c0_0 = arith.constant 0 : index
    %c0_1 = arith.constant 0 : index
    %0 = vector.load %arg1[%c0, %c0_0, %c0_1] : memref<2x4x1xf32, #tpu.memory_space<vmem>>, vector<2x4x1xf32>
    %1 = vector.extract_strided_slice %0 {offsets = [0, 0, 0], sizes = [2, 1, 1], strides = [1, 1, 1]} : vector<2x4x1xf32> to vector<2x1x1xf32>
    %2 = vector.extract_strided_slice %0 {offsets = [0, 1, 0], sizes = [2, 1, 1], strides = [1, 1, 1]} : vector<2x4x1xf32> to vector<2x1x1xf32>
    %3 = vector.extract_strided_slice %0 {offsets = [0, 2, 0], sizes = [2, 1, 1], strides = [1, 1, 1]} : vector<2x4x1xf32> to vector<2x1x1xf32>
    %4 = vector.extract_strided_slice %0 {offsets = [0, 3, 0], sizes = [2, 1, 1], strides = [1, 1, 1]} : vector<2x4x1xf32> to vector<2x1x1xf32>
    %c0_2 = arith.constant 0 : index
    %c0_3 = arith.constant 0 : index
    %c0_4 = arith.constant 0 : index
    %5 = vector.load %arg2[%c0_2, %c0_3, %c0_4] : memref<2x16x32xf32, #tpu.memory_space<vmem>>, vector<2x16x32xf32>
    %c0_5 = arith.constant 0 : index
    %c0_6 = arith.constant 0 : index
    %c0_7 = arith.constant 0 : index
    %6 = vector.load %arg3[%c0_5, %c0_6, %c0_7] : memref<2x16x32xf32, #tpu.memory_space<vmem>>, vector<2x16x32xf32>
    %cst = arith.constant 1.000000e+00 : f32
    %7 = vector.broadcast %cst : f32 to vector<2x1x1xf32>
    %8 = arith.subf %7, %2 : vector<2x1x1xf32>
    %9 = vector.broadcast %8 : vector<2x1x1xf32> to vector<2x16x32xf32>
    %10 = arith.mulf %9, %6 : vector<2x16x32xf32>
    %11 = vector.broadcast %2 : vector<2x1x1xf32> to vector<2x16x32xf32>
    %12 = arith.mulf %11, %5 : vector<2x16x32xf32>
    %13 = arith.addf %10, %12 : vector<2x16x32xf32>
    %c0_8 = arith.constant 0 : index
    %c0_9 = arith.constant 0 : index
    %c0_10 = arith.constant 0 : index
    %14 = vector.load %arg5[%c0_8, %c0_9, %c0_10] : memref<2x16x16xf32, #tpu.memory_space<vmem>>, vector<2x16x16xf32>
    "tpu.trace_start"() <{level = 10 : i32, message = "bij,bjd->bid"}> : () -> ()
    %cst_11 = arith.constant dense<0.000000e+00> : vector<2x16x32xf32>
    %15 = tpu.matmul %14, %13, %cst_11 {dimension_numbers = #tpu.dot_dimension_numbers<[2], [1], [1], [2], [0, 0, 0, 1, 1, 2], [0], [0]>} : vector<2x16x16xf32>, vector<2x16x32xf32>, vector<2x16x32xf32> -> vector<2x16x32xf32>
    "tpu.trace_stop"() : () -> ()
    %c0_12 = arith.constant 0 : index
    %c0_13 = arith.constant 0 : index
    %c0_14 = arith.constant 0 : index
    %16 = vector.load %arg10[%c0_12, %c0_13, %c0_14] : memref<2x32x32xf32, #tpu.memory_space<vmem>>, vector<2x32x32xf32>
    "tpu.trace_start"() <{level = 10 : i32, message = "bnd,bde->bne"}> : () -> ()
    %cst_15 = arith.constant dense<0.000000e+00> : vector<2x16x32xf32>
    %17 = tpu.matmul %15, %16, %cst_15 {dimension_numbers = #tpu.dot_dimension_numbers<[2], [1], [1], [2], [0, 0, 0, 1, 1, 2], [0], [0]>} : vector<2x16x32xf32>, vector<2x32x32xf32>, vector<2x16x32xf32> -> vector<2x16x32xf32>
    "tpu.trace_stop"() : () -> ()
    %c0_16 = arith.constant 0 : index
    %c0_17 = arith.constant 0 : index
    %c0_18 = arith.constant 0 : index
    %18 = vector.load %arg7[%c0_16, %c0_17, %c0_18] : memref<2x16x1xf32, #tpu.memory_space<vmem>>, vector<2x16x1xf32>
    %19 = vector.broadcast %18 : vector<2x16x1xf32> to vector<2x16x32xf32>
    %20 = arith.addf %17, %19 : vector<2x16x32xf32>
    %21 = vector.broadcast %1 : vector<2x1x1xf32> to vector<2x16x32xf32>
    %22 = arith.mulf %21, %20 : vector<2x16x32xf32>
    %cst_19 = arith.constant 0.001953125 : f32
    %23 = vector.broadcast %cst_19 : f32 to vector<2x16x32xf32>
    %24 = arith.mulf %22, %23 : vector<2x16x32xf32>
    %25 = arith.subf %5, %24 : vector<2x16x32xf32>
    %c0_20 = arith.constant 0 : index
    %c0_21 = arith.constant 0 : index
    %c0_22 = arith.constant 0 : index
    %26 = vector.load %arg8[%c0_20, %c0_21, %c0_22] : memref<2x16x1xf32, #tpu.memory_space<vmem>>, vector<2x16x1xf32>
    %c0_23 = arith.constant 0 : index
    %c0_24 = arith.constant 0 : index
    %c0_25 = arith.constant 0 : index
    %27 = vector.load %arg9[%c0_23, %c0_24, %c0_25] : memref<2x16x1xf32, #tpu.memory_space<vmem>>, vector<2x16x1xf32>
    %28 = vector.broadcast %26 : vector<2x16x1xf32> to vector<2x16x32xf32>
    %29 = arith.maximumf %28, %25 : vector<2x16x32xf32>
    %30 = vector.broadcast %27 : vector<2x16x1xf32> to vector<2x16x32xf32>
    %31 = arith.minimumf %30, %29 : vector<2x16x32xf32>
    %cst_26 = arith.constant 1.000000e+00 : f32
    %32 = vector.broadcast %cst_26 : f32 to vector<2x1x1xf32>
    %33 = arith.subf %32, %2 : vector<2x1x1xf32>
    %34 = vector.broadcast %33 : vector<2x1x1xf32> to vector<2x16x32xf32>
    %35 = arith.mulf %34, %6 : vector<2x16x32xf32>
    %36 = vector.broadcast %2 : vector<2x1x1xf32> to vector<2x16x32xf32>
    %37 = arith.mulf %36, %31 : vector<2x16x32xf32>
    %38 = arith.addf %35, %37 : vector<2x16x32xf32>
    %c0_27 = arith.constant 0 : index
    %c0_28 = arith.constant 0 : index
    %c0_29 = arith.constant 0 : index
    %39 = vector.load %arg12[%c0_27, %c0_28, %c0_29] : memref<2x16x32xf32, #tpu.memory_space<vmem>>, vector<2x16x32xf32>
    tpu.vector_store %arg12[%c0_27, %c0_28, %c0_29], %31 {strides = array<i32>} : memref<2x16x32xf32, #tpu.memory_space<vmem>>, vector<2x16x32xf32>,
    %c0_30 = arith.constant 0 : index
    %c0_31 = arith.constant 0 : index
    %c0_32 = arith.constant 0 : index
    %40 = vector.load %arg13[%c0_30, %c0_31, %c0_32] : memref<2x16x32xf32, #tpu.memory_space<vmem>>, vector<2x16x32xf32>
    tpu.vector_store %arg13[%c0_30, %c0_31, %c0_32], %38 {strides = array<i32>} : memref<2x16x32xf32, #tpu.memory_space<vmem>>, vector<2x16x32xf32>,
    %41 = arith.subf %31, %5 : vector<2x16x32xf32>
    %42 = vector.broadcast %4 : vector<2x1x1xf32> to vector<2x16x32xf32>
    %43 = arith.mulf %42, %41 : vector<2x16x32xf32>
    %44 = arith.addf %43, %31 : vector<2x16x32xf32>
    %c0_33 = arith.constant 0 : index
    %c0_34 = arith.constant 0 : index
    %c0_35 = arith.constant 0 : index
    %45 = vector.load %arg6[%c0_33, %c0_34, %c0_35] : memref<2x8x16xf32, #tpu.memory_space<vmem>>, vector<2x8x16xf32>
    "tpu.trace_start"() <{level = 10 : i32, message = "bmn,bnd->bmd"}> : () -> ()
    %cst_36 = arith.constant dense<0.000000e+00> : vector<2x8x32xf32>
    %46 = tpu.matmul %45, %44, %cst_36 {dimension_numbers = #tpu.dot_dimension_numbers<[2], [1], [1], [2], [0, 0, 0, 1, 1, 2], [0], [0]>} : vector<2x8x16xf32>, vector<2x16x32xf32>, vector<2x8x32xf32> -> vector<2x8x32xf32>
    "tpu.trace_stop"() : () -> ()
    %c0_37 = arith.constant 0 : index
    %c0_38 = arith.constant 0 : index
    %c0_39 = arith.constant 0 : index
    %47 = vector.load %arg11[%c0_37, %c0_38, %c0_39] : memref<2x32x32xf32, #tpu.memory_space<vmem>>, vector<2x32x32xf32>
    "tpu.trace_start"() <{level = 10 : i32, message = "bmd,bde->bme"}> : () -> ()
    %cst_40 = arith.constant dense<0.000000e+00> : vector<2x8x32xf32>
    %48 = tpu.matmul %46, %47, %cst_40 {dimension_numbers = #tpu.dot_dimension_numbers<[2], [1], [1], [2], [0, 0, 0, 1, 1, 2], [0], [0]>} : vector<2x8x32xf32>, vector<2x32x32xf32>, vector<2x8x32xf32> -> vector<2x8x32xf32>
    "tpu.trace_stop"() : () -> ()
    %c0_41 = arith.constant 0 : index
    %c0_42 = arith.constant 0 : index
    %c0_43 = arith.constant 0 : index
    %49 = vector.load %arg4[%c0_41, %c0_42, %c0_43] : memref<2x8x32xf32, #tpu.memory_space<vmem>>, vector<2x8x32xf32>
    %50 = vector.broadcast %3 : vector<2x1x1xf32> to vector<2x8x32xf32>
    %51 = arith.mulf %50, %48 : vector<2x8x32xf32>
    %52 = arith.subf %49, %51 : vector<2x8x32xf32>
    %cst_44 = arith.constant 0.000000e+00 : f32
    %53 = vector.broadcast %cst_44 : f32 to vector<2x8x32xf32>
    %54 = arith.maximumf %52, %53 : vector<2x8x32xf32>
    %c0_45 = arith.constant 0 : index
    %c0_46 = arith.constant 0 : index
    %c0_47 = arith.constant 0 : index
    %55 = vector.load %arg14[%c0_45, %c0_46, %c0_47] : memref<2x8x32xf32, #tpu.memory_space<vmem>>, vector<2x8x32xf32>
    tpu.vector_store %arg14[%c0_45, %c0_46, %c0_47], %54 {strides = array<i32>} : memref<2x8x32xf32, #tpu.memory_space<vmem>>, vector<2x8x32xf32>,
    return
  }
  func.func @transform_0(%arg0: i32) -> (i32, i32, i32) {
    %c0_i32 = arith.constant 0 : i32
    %c0_i32_0 = arith.constant 0 : i32
    %c0_i32_1 = arith.constant 0 : i32
    return %arg0, %c0_i32, %c0_i32_0 : i32, i32, i32
  }
  func.func @transform_1(%arg0: i32) -> (i32, i32, i32) {
    %c0_i32 = arith.constant 0 : i32
    %c0_i32_0 = arith.constant 0 : i32
    %c0_i32_1 = arith.constant 0 : i32
    return %arg0, %c0_i32, %c0_i32_0 : i32, i32, i32
  }
  func.func @transform_2(%arg0: i32) -> (i32, i32, i32) {
    %c0_i32 = arith.constant 0 : i32
    %c0_i32_0 = arith.constant 0 : i32
    %c0_i32_1 = arith.constant 0 : i32
    return %arg0, %c0_i32, %c0_i32_0 : i32, i32, i32
  }
  func.func @transform_3(%arg0: i32) -> (i32, i32, i32) {
    %c0_i32 = arith.constant 0 : i32
    %c0_i32_0 = arith.constant 0 : i32
    %c0_i32_1 = arith.constant 0 : i32
    return %arg0, %c0_i32, %c0_i32_0 : i32, i32, i32
  }
  func.func @transform_4(%arg0: i32) -> (i32, i32, i32) {
    %c0_i32 = arith.constant 0 : i32
    %c0_i32_0 = arith.constant 0 : i32
    %c0_i32_1 = arith.constant 0 : i32
    return %arg0, %c0_i32, %c0_i32_0 : i32, i32, i32
  }
  func.func @transform_5(%arg0: i32) -> (i32, i32, i32) {
    %c0_i32 = arith.constant 0 : i32
    %c0_i32_0 = arith.constant 0 : i32
    %c0_i32_1 = arith.constant 0 : i32
    return %arg0, %c0_i32, %c0_i32_0 : i32, i32, i32
  }
  func.func @transform_6(%arg0: i32) -> (i32, i32, i32) {
    %c0_i32 = arith.constant 0 : i32
    %c0_i32_0 = arith.constant 0 : i32
    %c0_i32_1 = arith.constant 0 : i32
    return %arg0, %c0_i32, %c0_i32_0 : i32, i32, i32
  }
  func.func @transform_7(%arg0: i32) -> (i32, i32, i32) {
    %c0_i32 = arith.constant 0 : i32
    %c0_i32_0 = arith.constant 0 : i32
    %c0_i32_1 = arith.constant 0 : i32
    return %arg0, %c0_i32, %c0_i32_0 : i32, i32, i32
  }
  func.func @transform_8(%arg0: i32) -> (i32, i32, i32) {
    %c0_i32 = arith.constant 0 : i32
    %c0_i32_0 = arith.constant 0 : i32
    %c0_i32_1 = arith.constant 0 : i32
    return %arg0, %c0_i32, %c0_i32_0 : i32, i32, i32
  }
  func.func @transform_9(%arg0: i32) -> (i32, i32, i32) {
    %c0_i32 = arith.constant 0 : i32
    %c0_i32_0 = arith.constant 0 : i32
    %c0_i32_1 = arith.constant 0 : i32
    return %arg0, %c0_i32, %c0_i32_0 : i32, i32, i32
  }
  func.func @transform_10(%arg0: i32) -> (i32, i32, i32) {
    %c0_i32 = arith.constant 0 : i32
    %c0_i32_0 = arith.constant 0 : i32
    %c0_i32_1 = arith.constant 0 : i32
    return %arg0, %c0_i32, %c0_i32_0 : i32, i32, i32
  }
  func.func @transform_11(%arg0: i32) -> (i32, i32, i32) {
    %c0_i32 = arith.constant 0 : i32
    %c0_i32_0 = arith.constant 0 : i32
    %c0_i32_1 = arith.constant 0 : i32
    return %arg0, %c0_i32, %c0_i32_0 : i32, i32, i32
  }
  func.func @transform_12(%arg0: i32) -> (i32, i32, i32) {
    %c0_i32 = arith.constant 0 : i32
    %c0_i32_0 = arith.constant 0 : i32
    %c0_i32_1 = arith.constant 0 : i32
    return %arg0, %c0_i32, %c0_i32_0 : i32, i32, i32
  }
  func.func @transform_13(%arg0: i32) -> (i32, i32, i32) {
    %c0_i32 = arith.constant 0 : i32
    %c0_i32_0 = arith.constant 0 : i32
    %c0_i32_1 = arith.constant 0 : i32
    return %arg0, %c0_i32, %c0_i32_0 : i32, i32, i32
  }
}

module attributes {stable_mosaic.version = 11 : i64} {
  func.func @pdqp_layer_kernel(%arg0: i32, %arg1: memref<2x4x1xf32, #tpu.memory_space<vmem>>, %arg2: memref<2x16x32xf32, #tpu.memory_space<vmem>>, %arg3: memref<2x16x32xf32, #tpu.memory_space<vmem>>, %arg4: memref<2x8x32xf32, #tpu.memory_space<vmem>>, %arg5: memref<2x16x16xf32, #tpu.memory_space<vmem>>, %arg6: memref<2x8x16xf32, #tpu.memory_space<vmem>>, %arg7: memref<2x16x1xf32, #tpu.memory_space<vmem>>, %arg8: memref<2x16x1xf32, #tpu.memory_space<vmem>>, %arg9: memref<2x16x1xf32, #tpu.memory_space<vmem>>, %arg10: memref<2x32x32xf32, #tpu.memory_space<vmem>>, %arg11: memref<2x32x32xf32, #tpu.memory_space<vmem>>, %arg12: memref<2x16x32xf32, #tpu.memory_space<vmem>>, %arg13: memref<2x16x32xf32, #tpu.memory_space<vmem>>, %arg14: memref<2x8x32xf32, #tpu.memory_space<vmem>>) attributes {dimension_semantics = [#tpu.dimension_semantics<parallel>], iteration_bounds = array<i64: 2>, scalar_prefetch = 0 : i64, scratch_operands = 0 : i64, tpu.core_type = #tpu.core_type<tc>, window_params = [{transform_indices = @transform_0, window_bounds = array<i64: 2, 4, 1>}, {transform_indices = @transform_1, window_bounds = array<i64: 2, 16, 32>}, {transform_indices = @transform_2, window_bounds = array<i64: 2, 16, 32>}, {transform_indices = @transform_3, window_bounds = array<i64: 2, 8, 32>}, {transform_indices = @transform_4, window_bounds = array<i64: 2, 16, 16>}, {transform_indices = @transform_5, window_bounds = array<i64: 2, 8, 16>}, {transform_indices = @transform_6, window_bounds = array<i64: 2, 16, 1>}, {transform_indices = @transform_7, window_bounds = array<i64: 2, 16, 1>}, {transform_indices = @transform_8, window_bounds = array<i64: 2, 16, 1>}, {transform_indices = @transform_9, window_bounds = array<i64: 2, 32, 32>}, {transform_indices = @transform_10, window_bounds = array<i64: 2, 32, 32>}, {transform_indices = @transform_11, window_bounds = array<i64: 2, 16, 32>}, {transform_indices = @transform_12, window_bounds = array<i64: 2, 16, 32>}, {transform_indices = @transform_13, window_bounds = array<i64: 2, 8, 32>}]} {
    %c0 = arith.constant 0 : index
    %c0_0 = arith.constant 0 : index
    %c0_1 = arith.constant 0 : index
    %0 = vector.load %arg1[%c0, %c0_0, %c0_1] : memref<2x4x1xf32, #tpu.memory_space<vmem>>, vector<2x4x1xf32>
    %1 = vector.extract_strided_slice %0 {offsets = [0, 0, 0], sizes = [2, 1, 1], strides = [1, 1, 1]} : vector<2x4x1xf32> to vector<2x1x1xf32>
    %2 = vector.extract_strided_slice %0 {offsets = [0, 1, 0], sizes = [2, 1, 1], strides = [1, 1, 1]} : vector<2x4x1xf32> to vector<2x1x1xf32>
    %3 = vector.extract_strided_slice %0 {offsets = [0, 2, 0], sizes = [2, 1, 1], strides = [1, 1, 1]} : vector<2x4x1xf32> to vector<2x1x1xf32>
    %4 = vector.extract_strided_slice %0 {offsets = [0, 3, 0], sizes = [2, 1, 1], strides = [1, 1, 1]} : vector<2x4x1xf32> to vector<2x1x1xf32>
    %c0_2 = arith.constant 0 : index
    %c0_3 = arith.constant 0 : index
    %c0_4 = arith.constant 0 : index
    %5 = vector.load %arg2[%c0_2, %c0_3, %c0_4] : memref<2x16x32xf32, #tpu.memory_space<vmem>>, vector<2x16x32xf32>
    %c0_5 = arith.constant 0 : index
    %c0_6 = arith.constant 0 : index
    %c0_7 = arith.constant 0 : index
    %6 = vector.load %arg3[%c0_5, %c0_6, %c0_7] : memref<2x16x32xf32, #tpu.memory_space<vmem>>, vector<2x16x32xf32>
    %cst = arith.constant 1.000000e+00 : f32
    %7 = vector.broadcast %cst : f32 to vector<2x1x1xf32>
    %8 = arith.subf %7, %2 : vector<2x1x1xf32>
    %9 = vector.broadcast %8 : vector<2x1x1xf32> to vector<2x16x32xf32>
    %10 = arith.mulf %9, %6 : vector<2x16x32xf32>
    %11 = vector.broadcast %2 : vector<2x1x1xf32> to vector<2x16x32xf32>
    %12 = arith.mulf %11, %5 : vector<2x16x32xf32>
    %13 = arith.addf %10, %12 : vector<2x16x32xf32>
    %c0_8 = arith.constant 0 : index
    %c0_9 = arith.constant 0 : index
    %c0_10 = arith.constant 0 : index
    %14 = vector.load %arg5[%c0_8, %c0_9, %c0_10] : memref<2x16x16xf32, #tpu.memory_space<vmem>>, vector<2x16x16xf32>
    "tpu.trace_start"() <{level = 10 : i32, message = "bij,bjd->bid"}> : () -> ()
    %cst_11 = arith.constant dense<0.000000e+00> : vector<2x16x32xf32>
    %15 = tpu.matmul %14, %13, %cst_11 {dimension_numbers = #tpu.dot_dimension_numbers<[2], [1], [1], [2], [0, 0, 0, 1, 1, 2], [0], [0]>} : vector<2x16x16xf32>, vector<2x16x32xf32>, vector<2x16x32xf32> -> vector<2x16x32xf32>
    "tpu.trace_stop"() : () -> ()
    %c0_12 = arith.constant 0 : index
    %c0_13 = arith.constant 0 : index
    %c0_14 = arith.constant 0 : index
    %16 = vector.load %arg10[%c0_12, %c0_13, %c0_14] : memref<2x32x32xf32, #tpu.memory_space<vmem>>, vector<2x32x32xf32>
    "tpu.trace_start"() <{level = 10 : i32, message = "bnd,bde->bne"}> : () -> ()
    %cst_15 = arith.constant dense<0.000000e+00> : vector<2x16x32xf32>
    %17 = tpu.matmul %15, %16, %cst_15 {dimension_numbers = #tpu.dot_dimension_numbers<[2], [1], [1], [2], [0, 0, 0, 1, 1, 2], [0], [0]>} : vector<2x16x32xf32>, vector<2x32x32xf32>, vector<2x16x32xf32> -> vector<2x16x32xf32>
    "tpu.trace_stop"() : () -> ()
    %c0_16 = arith.constant 0 : index
    %c0_17 = arith.constant 0 : index
    %c0_18 = arith.constant 0 : index
    %18 = vector.load %arg7[%c0_16, %c0_17, %c0_18] : memref<2x16x1xf32, #tpu.memory_space<vmem>>, vector<2x16x1xf32>
    %19 = vector.broadcast %18 : vector<2x16x1xf32> to vector<2x16x32xf32>
    %20 = arith.addf %17, %19 : vector<2x16x32xf32>
    %21 = vector.broadcast %1 : vector<2x1x1xf32> to vector<2x16x32xf32>
    %22 = arith.mulf %21, %20 : vector<2x16x32xf32>
    %cst_19 = arith.constant 0.001953125 : f32
    %23 = vector.broadcast %cst_19 : f32 to vector<2x16x32xf32>
    %24 = arith.mulf %22, %23 : vector<2x16x32xf32>
    %25 = arith.subf %5, %24 : vector<2x16x32xf32>
    %c0_20 = arith.constant 0 : index
    %c0_21 = arith.constant 0 : index
    %c0_22 = arith.constant 0 : index
    %26 = vector.load %arg8[%c0_20, %c0_21, %c0_22] : memref<2x16x1xf32, #tpu.memory_space<vmem>>, vector<2x16x1xf32>
    %c0_23 = arith.constant 0 : index
    %c0_24 = arith.constant 0 : index
    %c0_25 = arith.constant 0 : index
    %27 = vector.load %arg9[%c0_23, %c0_24, %c0_25] : memref<2x16x1xf32, #tpu.memory_space<vmem>>, vector<2x16x1xf32>
    %28 = vector.broadcast %26 : vector<2x16x1xf32> to vector<2x16x32xf32>
    %29 = arith.maximumf %28, %25 : vector<2x16x32xf32>
    %30 = vector.broadcast %27 : vector<2x16x1xf32> to vector<2x16x32xf32>
    %31 = arith.minimumf %30, %29 : vector<2x16x32xf32>
    %cst_26 = arith.constant 1.000000e+00 : f32
    %32 = vector.broadcast %cst_26 : f32 to vector<2x1x1xf32>
    %33 = arith.subf %32, %2 : vector<2x1x1xf32>
    %34 = vector.broadcast %33 : vector<2x1x1xf32> to vector<2x16x32xf32>
    %35 = arith.mulf %34, %6 : vector<2x16x32xf32>
    %36 = vector.broadcast %2 : vector<2x1x1xf32> to vector<2x16x32xf32>
    %37 = arith.mulf %36, %31 : vector<2x16x32xf32>
    %38 = arith.addf %35, %37 : vector<2x16x32xf32>
    %c0_27 = arith.constant 0 : index
    %c0_28 = arith.constant 0 : index
    %c0_29 = arith.constant 0 : index
    %39 = vector.load %arg12[%c0_27, %c0_28, %c0_29] : memref<2x16x32xf32, #tpu.memory_space<vmem>>, vector<2x16x32xf32>
    tpu.vector_store %arg12[%c0_27, %c0_28, %c0_29], %31 {strides = array<i32>} : memref<2x16x32xf32, #tpu.memory_space<vmem>>, vector<2x16x32xf32>,
    %c0_30 = arith.constant 0 : index
    %c0_31 = arith.constant 0 : index
    %c0_32 = arith.constant 0 : index
    %40 = vector.load %arg13[%c0_30, %c0_31, %c0_32] : memref<2x16x32xf32, #tpu.memory_space<vmem>>, vector<2x16x32xf32>
    tpu.vector_store %arg13[%c0_30, %c0_31, %c0_32], %38 {strides = array<i32>} : memref<2x16x32xf32, #tpu.memory_space<vmem>>, vector<2x16x32xf32>,
    %41 = arith.subf %31, %5 : vector<2x16x32xf32>
    %42 = vector.broadcast %4 : vector<2x1x1xf32> to vector<2x16x32xf32>
    %43 = arith.mulf %42, %41 : vector<2x16x32xf32>
    %44 = arith.addf %43, %31 : vector<2x16x32xf32>
    %c0_33 = arith.constant 0 : index
    %c0_34 = arith.constant 0 : index
    %c0_35 = arith.constant 0 : index
    %45 = vector.load %arg6[%c0_33, %c0_34, %c0_35] : memref<2x8x16xf32, #tpu.memory_space<vmem>>, vector<2x8x16xf32>
    "tpu.trace_start"() <{level = 10 : i32, message = "bmn,bnd->bmd"}> : () -> ()
    %cst_36 = arith.constant dense<0.000000e+00> : vector<2x8x32xf32>
    %46 = tpu.matmul %45, %44, %cst_36 {dimension_numbers = #tpu.dot_dimension_numbers<[2], [1], [1], [2], [0, 0, 0, 1, 1, 2], [0], [0]>} : vector<2x8x16xf32>, vector<2x16x32xf32>, vector<2x8x32xf32> -> vector<2x8x32xf32>
    "tpu.trace_stop"() : () -> ()
    %c0_37 = arith.constant 0 : index
    %c0_38 = arith.constant 0 : index
    %c0_39 = arith.constant 0 : index
    %47 = vector.load %arg11[%c0_37, %c0_38, %c0_39] : memref<2x32x32xf32, #tpu.memory_space<vmem>>, vector<2x32x32xf32>
    "tpu.trace_start"() <{level = 10 : i32, message = "bmd,bde->bme"}> : () -> ()
    %cst_40 = arith.constant dense<0.000000e+00> : vector<2x8x32xf32>
    %48 = tpu.matmul %46, %47, %cst_40 {dimension_numbers = #tpu.dot_dimension_numbers<[2], [1], [1], [2], [0, 0, 0, 1, 1, 2], [0], [0]>} : vector<2x8x32xf32>, vector<2x32x32xf32>, vector<2x8x32xf32> -> vector<2x8x32xf32>
    "tpu.trace_stop"() : () -> ()
    %c0_41 = arith.constant 0 : index
    %c0_42 = arith.constant 0 : index
    %c0_43 = arith.constant 0 : index
    %49 = vector.load %arg4[%c0_41, %c0_42, %c0_43] : memref<2x8x32xf32, #tpu.memory_space<vmem>>, vector<2x8x32xf32>
    %50 = vector.broadcast %3 : vector<2x1x1xf32> to vector<2x8x32xf32>
    %51 = arith.mulf %50, %48 : vector<2x8x32xf32>
    %52 = arith.subf %49, %51 : vector<2x8x32xf32>
    %cst_44 = arith.constant 0.000000e+00 : f32
    %53 = vector.broadcast %cst_44 : f32 to vector<2x8x32xf32>
    %54 = arith.maximumf %52, %53 : vector<2x8x32xf32>
    %c0_45 = arith.constant 0 : index
    %c0_46 = arith.constant 0 : index
    %c0_47 = arith.constant 0 : index
    %55 = vector.load %arg14[%c0_45, %c0_46, %c0_47] : memref<2x8x32xf32, #tpu.memory_space<vmem>>, vector<2x8x32xf32>
    tpu.vector_store %arg14[%c0_45, %c0_46, %c0_47], %54 {strides = array<i32>} : memref<2x8x32xf32, #tpu.memory_space<vmem>>, vector<2x8x32xf32>,
    return
  }
  func.func @transform_0(%arg0: i32) -> (i32, i32, i32) {
    %c0_i32 = arith.constant 0 : i32
    %c0_i32_0 = arith.constant 0 : i32
    %c0_i32_1 = arith.constant 0 : i32
    return %arg0, %c0_i32, %c0_i32_0 : i32, i32, i32
  }
  func.func @transform_1(%arg0: i32) -> (i32, i32, i32) {
    %c0_i32 = arith.constant 0 : i32
    %c0_i32_0 = arith.constant 0 : i32
    %c0_i32_1 = arith.constant 0 : i32
    return %arg0, %c0_i32, %c0_i32_0 : i32, i32, i32
  }
  func.func @transform_2(%arg0: i32) -> (i32, i32, i32) {
    %c0_i32 = arith.constant 0 : i32
    %c0_i32_0 = arith.constant 0 : i32
    %c0_i32_1 = arith.constant 0 : i32
    return %arg0, %c0_i32, %c0_i32_0 : i32, i32, i32
  }
  func.func @transform_3(%arg0: i32) -> (i32, i32, i32) {
    %c0_i32 = arith.constant 0 : i32
    %c0_i32_0 = arith.constant 0 : i32
    %c0_i32_1 = arith.constant 0 : i32
    return %arg0, %c0_i32, %c0_i32_0 : i32, i32, i32
  }
  func.func @transform_4(%arg0: i32) -> (i32, i32, i32) {
    %c0_i32 = arith.constant 0 : i32
    %c0_i32_0 = arith.constant 0 : i32
    %c0_i32_1 = arith.constant 0 : i32
    return %arg0, %c0_i32, %c0_i32_0 : i32, i32, i32
  }
  func.func @transform_5(%arg0: i32) -> (i32, i32, i32) {
    %c0_i32 = arith.constant 0 : i32
    %c0_i32_0 = arith.constant 0 : i32
    %c0_i32_1 = arith.constant 0 : i32
    return %arg0, %c0_i32, %c0_i32_0 : i32, i32, i32
  }
  func.func @transform_6(%arg0: i32) -> (i32, i32, i32) {
    %c0_i32 = arith.constant 0 : i32
    %c0_i32_0 = arith.constant 0 : i32
    %c0_i32_1 = arith.constant 0 : i32
    return %arg0, %c0_i32, %c0_i32_0 : i32, i32, i32
  }
  func.func @transform_7(%arg0: i32) -> (i32, i32, i32) {
    %c0_i32 = arith.constant 0 : i32
    %c0_i32_0 = arith.constant 0 : i32
    %c0_i32_1 = arith.constant 0 : i32
    return %arg0, %c0_i32, %c0_i32_0 : i32, i32, i32
  }
  func.func @transform_8(%arg0: i32) -> (i32, i32, i32) {
    %c0_i32 = arith.constant 0 : i32
    %c0_i32_0 = arith.constant 0 : i32
    %c0_i32_1 = arith.constant 0 : i32
    return %arg0, %c0_i32, %c0_i32_0 : i32, i32, i32
  }
  func.func @transform_9(%arg0: i32) -> (i32, i32, i32) {
    %c0_i32 = arith.constant 0 : i32
    %c0_i32_0 = arith.constant 0 : i32
    %c0_i32_1 = arith.constant 0 : i32
    return %arg0, %c0_i32, %c0_i32_0 : i32, i32, i32
  }
  func.func @transform_10(%arg0: i32) -> (i32, i32, i32) {
    %c0_i32 = arith.constant 0 : i32
    %c0_i32_0 = arith.constant 0 : i32
    %c0_i32_1 = arith.constant 0 : i32
    return %arg0, %c0_i32, %c0_i32_0 : i32, i32, i32
  }
  func.func @transform_11(%arg0: i32) -> (i32, i32, i32) {
    %c0_i32 = arith.constant 0 : i32
    %c0_i32_0 = arith.constant 0 : i32
    %c0_i32_1 = arith.constant 0 : i32
    return %arg0, %c0_i32, %c0_i32_0 : i32, i32, i32
  }
  func.func @transform_12(%arg0: i32) -> (i32, i32, i32) {
    %c0_i32 = arith.constant 0 : i32
    %c0_i32_0 = arith.constant 0 : i32
    %c0_i32_1 = arith.constant 0 : i32
    return %arg0, %c0_i32, %c0_i32_0 : i32, i32, i32
  }
  func.func @transform_13(%arg0: i32) -> (i32, i32, i32) {
    %c0_i32 = arith.constant 0 : i32
    %c0_i32_0 = arith.constant 0 : i32
    %c0_i32_1 = arith.constant 0 : i32
    return %arg0, %c0_i32, %c0_i32_0 : i32, i32, i32
  }
}

</mosaic_0001>

<llo_original>
// kernel: pdqp_net_forward.2
$region0: #{pdqp_net_forward.2}
  #allocation0 [shape = 'u32[]', space=smem, size = 0x4, offset = 0x4, fixed_abs, tag = 'smem constant byte address 0x4 - core index']
  #allocation1 [shape = 'u32[72,128]{1,0:T(1,128)}', space=vmem, size = 0x9000, scoped, tag = 'internal scratch']
  %s0 = inlined_call_operand.vmem [shape: f32[4,4,1], index: 0, kind: input, shape index: {}]
  %s1 = inlined_call_operand.vmem [shape: f32[4,16,32], index: 1, kind: input, shape index: {}, may-alias: {1,2}]
  %s2 = inlined_call_operand.vmem [shape: f32[4,16,32], index: 2, kind: input, shape index: {}, may-alias: {1,2}]
  %s3 = inlined_call_operand.vmem [shape: f32[4,8,32], index: 3, kind: input, shape index: {}]
  %s4 = inlined_call_operand.vmem [shape: f32[4,16,16], index: 4, kind: input, shape index: {}]
  %s5 = inlined_call_operand.vmem [shape: f32[4,8,16], index: 5, kind: input, shape index: {}]
  %s6 = inlined_call_operand.vmem [shape: f32[4,16,1], index: 6, kind: input, shape index: {}]
  %s7 = inlined_call_operand.vmem [shape: f32[4,16,1], index: 7, kind: input, shape index: {}]
  %s8 = inlined_call_operand.vmem [shape: f32[4,16,1], index: 8, kind: input, shape index: {}]
  %s9 = inlined_call_operand.vmem [shape: f32[4,32,32], index: 9, kind: input, shape index: {}]
  %s10 = inlined_call_operand.vmem [shape: f32[4,32,32], index: 10, kind: input, shape index: {}]
  %s11 = inlined_call_operand.vmem [shape: f32[4,16,32], index: 11, kind: output, shape index: {0}]
  %s12 = inlined_call_operand.vmem [shape: f32[4,16,32], index: 12, kind: output, shape index: {1}]
  %s13 = inlined_call_operand.vmem [shape: f32[4,8,32], index: 13, kind: output, shape index: {2}]
  %14 = xla_tuple %s11, %s12, %s13
  %s15 = sld [smem:[#allocation0]]
  $region93: #{pdqp_net_forward.2} parent=0
    _
  %s17 = ssub.s32 1, %s15
  %s18 = scalar_select 0, %s17, %s15
  loop: start=0, step=1, limit=4
  $region2: #{pdqp_net_forward.2} parent=0 // loop_pre_header
    _
  $region3: #{pdqp_net_forward.2} parent=0 // loop_header
    %s20 = sphi 0, %s24
    %p21 = scmp.ge.s32.totalorder %s20, 4
    %s30 = sphi 0, %s32
    %s33 = sphi 0, %s30
    %s34 = sphi 0, %s33
    %s50 = sphi 0, %s34
    %s56 = sphi 0, %s58
    %s59 = sphi 0, %s56
    %s60 = sphi 0, %s59
    %s76 = sphi 0, %s60
    %s82 = sphi 0, %s84
    %s85 = sphi 0, %s82
    %s86 = sphi 0, %s85
    %s102 = sphi 0, %s86
    %s108 = sphi 0, %s110
    %s111 = sphi 0, %s108
    %s112 = sphi 0, %s111
    %s128 = sphi 0, %s112
    %s134 = sphi 0, %s136
    %s137 = sphi 0, %s134
    %s138 = sphi 0, %s137
    %s154 = sphi 0, %s138
    %s160 = sphi 0, %s162
    %s163 = sphi 0, %s160
    %s164 = sphi 0, %s163
    %s180 = sphi 0, %s164
    %s186 = sphi 0, %s188
    %s189 = sphi 0, %s186
    %s190 = sphi 0, %s189
    %s206 = sphi 0, %s190
    %s212 = sphi 0, %s214
    %s215 = sphi 0, %s212
    %s216 = sphi 0, %s215
    %s232 = sphi 0, %s216
    %s238 = sphi 0, %s240
    %s241 = sphi 0, %s238
    %s242 = sphi 0, %s241
    %s258 = sphi 0, %s242
    %s264 = sphi 0, %s266
    %s267 = sphi 0, %s264
    %s268 = sphi 0, %s267
    %s284 = sphi 0, %s268
    %s290 = sphi 0, %s292
    %s293 = sphi 0, %s290
    %s294 = sphi 0, %s293
    %s310 = sphi 0, %s294
    %s316 = sphi 0, %s318
    %s319 = sphi 0, %s316
    %s320 = sphi 0, %s319
    %s336 = sphi 0, %s320
    %s342 = sphi 0, %s344
    %s345 = sphi 0, %s342
    %s346 = sphi 0, %s345
    %s362 = sphi 0, %s346
    %s368 = sphi 0, %s370
    %s371 = sphi 0, %s368
    %s372 = sphi 0, %s371
    %s388 = sphi 0, %s372
  $region4: #{pdqp_net_forward.2} parent=0 // loop_header_branch
    %23 = sbr.rel (%p21) target = $region8
  $region5: #{pdqp_net_forward.2} parent=0 // loop_body
    %s25 = ssub.s32 %s20, 1
    %s26 = ssub.s32 %s20, 2
    %s27 = sadd.s32 %s20, 1
    %s28 = ssub.s32 %s20, %s27
    %p29 = scmp.eq.s32.totalorder %s28, 0
    %s31 = sadd.s32 %s30, 1
    %s32 = scalar_select %p29, %s30, %s31
    %p35 = pneg %p29
    %p36 = scmp.eq.s32.totalorder %s20, 1
    %p37 = por %p35, %p36
    %p38 = scmp.ne.s32.totalorder %s30, %s33
    %p39 = scmp.eq.s32.totalorder %s20, 0
    %p40 = por %p38, %p39
    %p41 = scmp.ne.s32.totalorder %s30, %s33
    %p42 = scmp.eq.s32.totalorder %s25, 1
    %p43 = por %p41, %p42
    %p44 = scmp.ne.s32.totalorder %s33, %s34
    %p45 = scmp.eq.s32.totalorder %s25, 0
    %p46 = por %p44, %p45
    %p47 = scmp.ne.s32.totalorder %s33, %s34
    %p48 = scmp.eq.s32.totalorder %s26, 1
    %p49 = por %p47, %p48
    %p51 = scmp.ne.s32.totalorder %s34, %s50
    %p52 = scmp.eq.s32.totalorder %s26, 0
    %p53 = por %p51, %p52
    %s54 = ssub.s32 %s20, %s27
    %p55 = scmp.eq.s32.totalorder %s54, 0
    %s57 = sadd.s32 %s56, 1
    %s58 = scalar_select %p55, %s56, %s57
    %p61 = pneg %p55
    %p62 = scmp.eq.s32.totalorder %s20, 1
    %p63 = por %p61, %p62
    %p64 = scmp.ne.s32.totalorder %s56, %s59
    %p65 = scmp.eq.s32.totalorder %s20, 0
    %p66 = por %p64, %p65
    %p67 = scmp.ne.s32.totalorder %s56, %s59
    %p68 = scmp.eq.s32.totalorder %s25, 1
    %p69 = por %p67, %p68
    %p70 = scmp.ne.s32.totalorder %s59, %s60
    %p71 = scmp.eq.s32.totalorder %s25, 0
    %p72 = por %p70, %p71
    %p73 = scmp.ne.s32.totalorder %s59, %s60
    %p74 = scmp.eq.s32.totalorder %s26, 1
    %p75 = por %p73, %p74
    %p77 = scmp.ne.s32.totalorder %s60, %s76
    %p78 = scmp.eq.s32.totalorder %s26, 0
    %p79 = por %p77, %p78
    %s80 = ssub.s32 %s20, %s27
    %p81 = scmp.eq.s32.totalorder %s80, 0
    %s83 = sadd.s32 %s82, 1
    %s84 = scalar_select %p81, %s82, %s83
    %p87 = pneg %p81
    %p88 = scmp.eq.s32.totalorder %s20, 1
    %p89 = por %p87, %p88
    %p90 = scmp.ne.s32.totalorder %s82, %s85
    %p91 = scmp.eq.s32.totalorder %s20, 0
    %p92 = por %p90, %p91
    %p93 = scmp.ne.s32.totalorder %s82, %s85
    %p94 = scmp.eq.s32.totalorder %s25, 1
    %p95 = por %p93, %p94
    %p96 = scmp.ne.s32.totalorder %s85, %s86
    %p97 = scmp.eq.s32.totalorder %s25, 0
    %p98 = por %p96, %p97
    %p99 = scmp.ne.s32.totalorder %s85, %s86
    %p100 = scmp.eq.s32.totalorder %s26, 1
    %p101 = por %p99, %p100
    %p103 = scmp.ne.s32.totalorder %s86, %s102
    %p104 = scmp.eq.s32.totalorder %s26, 0
    %p105 = por %p103, %p104
    %s106 = ssub.s32 %s20, %s27
    %p107 = scmp.eq.s32.totalorder %s106, 0
    %s109 = sadd.s32 %s108, 1
    %s110 = scalar_select %p107, %s108, %s109
    %p113 = pneg %p107
    %p114 = scmp.eq.s32.totalorder %s20, 1
    %p115 = por %p113, %p114
    %p116 = scmp.ne.s32.totalorder %s108, %s111
    %p117 = scmp.eq.s32.totalorder %s20, 0
    %p118 = por %p116, %p117
    %p119 = scmp.ne.s32.totalorder %s108, %s111
    %p120 = scmp.eq.s32.totalorder %s25, 1
    %p121 = por %p119, %p120
    %p122 = scmp.ne.s32.totalorder %s111, %s112
    %p123 = scmp.eq.s32.totalorder %s25, 0
    %p124 = por %p122, %p123
    %p125 = scmp.ne.s32.totalorder %s111, %s112
    %p126 = scmp.eq.s32.totalorder %s26, 1
    %p127 = por %p125, %p126
    %p129 = scmp.ne.s32.totalorder %s112, %s128
    %p130 = scmp.eq.s32.totalorder %s26, 0
    %p131 = por %p129, %p130
    %s132 = ssub.s32 %s20, %s27
    %p133 = scmp.eq.s32.totalorder %s132, 0
    %s135 = sadd.s32 %s134, 1
    %s136 = scalar_select %p133, %s134, %s135
    %p139 = pneg %p133
    %p140 = scmp.eq.s32.totalorder %s20, 1
    %p141 = por %p139, %p140
    %p142 = scmp.ne.s32.totalorder %s134, %s137
    %p143 = scmp.eq.s32.totalorder %s20, 0
    %p144 = por %p142, %p143
    %p145 = scmp.ne.s32.totalorder %s134, %s137
    %p146 = scmp.eq.s32.totalorder %s25, 1
    %p147 = por %p145, %p146
    %p148 = scmp.ne.s32.totalorder %s137, %s138
    %p149 = scmp.eq.s32.totalorder %s25, 0
    %p150 = por %p148, %p149
    %p151 = scmp.ne.s32.totalorder %s137, %s138
    %p152 = scmp.eq.s32.totalorder %s26, 1
    %p153 = por %p151, %p152
    %p155 = scmp.ne.s32.totalorder %s138, %s154
    %p156 = scmp.eq.s32.totalorder %s26, 0
    %p157 = por %p155, %p156
    %s158 = ssub.s32 %s20, %s27
    %p159 = scmp.eq.s32.totalorder %s158, 0
    %s161 = sadd.s32 %s160, 1
    %s162 = scalar_select %p159, %s160, %s161
    %p165 = pneg %p159
    %p166 = scmp.eq.s32.totalorder %s20, 1
    %p167 = por %p165, %p166
    %p168 = scmp.ne.s32.totalorder %s160, %s163
    %p169 = scmp.eq.s32.totalorder %s20, 0
    %p170 = por %p168, %p169
    %p171 = scmp.ne.s32.totalorder %s160, %s163
    %p172 = scmp.eq.s32.totalorder %s25, 1
    %p173 = por %p171, %p172
    %p174 = scmp.ne.s32.totalorder %s163, %s164
    %p175 = scmp.eq.s32.totalorder %s25, 0
    %p176 = por %p174, %p175
    %p177 = scmp.ne.s32.totalorder %s163, %s164
    %p178 = scmp.eq.s32.totalorder %s26, 1
    %p179 = por %p177, %p178
    %p181 = scmp.ne.s32.totalorder %s164, %s180
    %p182 = scmp.eq.s32.totalorder %s26, 0
    %p183 = por %p181, %p182
    %s184 = ssub.s32 %s20, %s27
    %p185 = scmp.eq.s32.totalorder %s184, 0
    %s187 = sadd.s32 %s186, 1
    %s188 = scalar_select %p185, %s186, %s187
    %p191 = pneg %p185
    %p192 = scmp.eq.s32.totalorder %s20, 1
    %p193 = por %p191, %p192
    %p194 = scmp.ne.s32.totalorder %s186, %s189
    %p195 = scmp.eq.s32.totalorder %s20, 0
    %p196 = por %p194, %p195
    %p197 = scmp.ne.s32.totalorder %s186, %s189
    %p198 = scmp.eq.s32.totalorder %s25, 1
    %p199 = por %p197, %p198
    %p200 = scmp.ne.s32.totalorder %s189, %s190
    %p201 = scmp.eq.s32.totalorder %s25, 0
    %p202 = por %p200, %p201
    %p203 = scmp.ne.s32.totalorder %s189, %s190
    %p204 = scmp.eq.s32.totalorder %s26, 1
    %p205 = por %p203, %p204
    %p207 = scmp.ne.s32.totalorder %s190, %s206
    %p208 = scmp.eq.s32.totalorder %s26, 0
    %p209 = por %p207, %p208
    %s210 = ssub.s32 %s20, %s27
    %p211 = scmp.eq.s32.totalorder %s210, 0
    %s213 = sadd.s32 %s212, 1
    %s214 = scalar_select %p211, %s212, %s213
    %p217 = pneg %p211
    %p218 = scmp.eq.s32.totalorder %s20, 1
    %p219 = por %p217, %p218
    %p220 = scmp.ne.s32.totalorder %s212, %s215
    %p221 = scmp.eq.s32.totalorder %s20, 0
    %p222 = por %p220, %p221
    %p223 = scmp.ne.s32.totalorder %s212, %s215
    %p224 = scmp.eq.s32.totalorder %s25, 1
    %p225 = por %p223, %p224
    %p226 = scmp.ne.s32.totalorder %s215, %s216
    %p227 = scmp.eq.s32.totalorder %s25, 0
    %p228 = por %p226, %p227
    %p229 = scmp.ne.s32.totalorder %s215, %s216
    %p230 = scmp.eq.s32.totalorder %s26, 1
    %p231 = por %p229, %p230
    %p233 = scmp.ne.s32.totalorder %s216, %s232
    %p234 = scmp.eq.s32.totalorder %s26, 0
    %p235 = por %p233, %p234
    %s236 = ssub.s32 %s20, %s27
    %p237 = scmp.eq.s32.totalorder %s236, 0
    %s239 = sadd.s32 %s238, 1
    %s240 = scalar_select %p237, %s238, %s239
    %p243 = pneg %p237
    %p244 = scmp.eq.s32.totalorder %s20, 1
    %p245 = por %p243, %p244
    %p246 = scmp.ne.s32.totalorder %s238, %s241
    %p247 = scmp.eq.s32.totalorder %s20, 0
    %p248 = por %p246, %p247
    %p249 = scmp.ne.s32.totalorder %s238, %s241
    %p250 = scmp.eq.s32.totalorder %s25, 1
    %p251 = por %p249, %p250
    %p252 = scmp.ne.s32.totalorder %s241, %s242
    %p253 = scmp.eq.s32.totalorder %s25, 0
    %p254 = por %p252, %p253
    %p255 = scmp.ne.s32.totalorder %s241, %s242
    %p256 = scmp.eq.s32.totalorder %s26, 1
    %p257 = por %p255, %p256
    %p259 = scmp.ne.s32.totalorder %s242, %s258
    %p260 = scmp.eq.s32.totalorder %s26, 0
    %p261 = por %p259, %p260
    %s262 = ssub.s32 %s20, %s27
    %p263 = scmp.eq.s32.totalorder %s262, 0
    %s265 = sadd.s32 %s264, 1
    %s266 = scalar_select %p263, %s264, %s265
    %p269 = pneg %p263
    %p270 = scmp.eq.s32.totalorder %s20, 1
    %p271 = por %p269, %p270
    %p272 = scmp.ne.s32.totalorder %s264, %s267
    %p273 = scmp.eq.s32.totalorder %s20, 0
    %p274 = por %p272, %p273
    %p275 = scmp.ne.s32.totalorder %s264, %s267
    %p276 = scmp.eq.s32.totalorder %s25, 1
    %p277 = por %p275, %p276
    %p278 = scmp.ne.s32.totalorder %s267, %s268
    %p279 = scmp.eq.s32.totalorder %s25, 0
    %p280 = por %p278, %p279
    %p281 = scmp.ne.s32.totalorder %s267, %s268
    %p282 = scmp.eq.s32.totalorder %s26, 1
    %p283 = por %p281, %p282
    %p285 = scmp.ne.s32.totalorder %s268, %s284
    %p286 = scmp.eq.s32.totalorder %s26, 0
    %p287 = por %p285, %p286
    %s288 = ssub.s32 %s20, %s27
    %p289 = scmp.eq.s32.totalorder %s288, 0
    %s291 = sadd.s32 %s290, 1
    %s292 = scalar_select %p289, %s290, %s291
    %p295 = pneg %p289
    %p296 = scmp.eq.s32.totalorder %s20, 1
    %p297 = por %p295, %p296
    %p298 = scmp.ne.s32.totalorder %s290, %s293
    %p299 = scmp.eq.s32.totalorder %s20, 0
    %p300 = por %p298, %p299
    %p301 = scmp.ne.s32.totalorder %s290, %s293
    %p302 = scmp.eq.s32.totalorder %s25, 1
    %p303 = por %p301, %p302
    %p304 = scmp.ne.s32.totalorder %s293, %s294
    %p305 = scmp.eq.s32.totalorder %s25, 0
    %p306 = por %p304, %p305
    %p307 = scmp.ne.s32.totalorder %s293, %s294
    %p308 = scmp.eq.s32.totalorder %s26, 1
    %p309 = por %p307, %p308
    %p311 = scmp.ne.s32.totalorder %s294, %s310
    %p312 = scmp.eq.s32.totalorder %s26, 0
    %p313 = por %p311, %p312
    %s314 = ssub.s32 %s20, %s27
    %p315 = scmp.eq.s32.totalorder %s314, 0
    %s317 = sadd.s32 %s316, 1
    %s318 = scalar_select %p315, %s316, %s317
    %p321 = pneg %p315
    %p322 = scmp.eq.s32.totalorder %s20, 1
    %p323 = por %p321, %p322
    %p324 = scmp.ne.s32.totalorder %s316, %s319
    %p325 = scmp.eq.s32.totalorder %s20, 0
    %p326 = por %p324, %p325
    %p327 = scmp.ne.s32.totalorder %s316, %s319
    %p328 = scmp.eq.s32.totalorder %s25, 1
    %p329 = por %p327, %p328
    %p330 = scmp.ne.s32.totalorder %s319, %s320
    %p331 = scmp.eq.s32.totalorder %s25, 0
    %p332 = por %p330, %p331
    %p333 = scmp.ne.s32.totalorder %s319, %s320
    %p334 = scmp.eq.s32.totalorder %s26, 1
    %p335 = por %p333, %p334
    %p337 = scmp.ne.s32.totalorder %s320, %s336
    %p338 = scmp.eq.s32.totalorder %s26, 0
    %p339 = por %p337, %p338
    %s340 = ssub.s32 %s20, %s27
    %p341 = scmp.eq.s32.totalorder %s340, 0
    %s343 = sadd.s32 %s342, 1
    %s344 = scalar_select %p341, %s342, %s343
    %p347 = pneg %p341
    %p348 = scmp.eq.s32.totalorder %s20, 1
    %p349 = por %p347, %p348
    %p350 = scmp.ne.s32.totalorder %s342, %s345
    %p351 = scmp.eq.s32.totalorder %s20, 0
    %p352 = por %p350, %p351
    %p353 = scmp.ne.s32.totalorder %s342, %s345
    %p354 = scmp.eq.s32.totalorder %s25, 1
    %p355 = por %p353, %p354
    %p356 = scmp.ne.s32.totalorder %s345, %s346
    %p357 = scmp.eq.s32.totalorder %s25, 0
    %p358 = por %p356, %p357
    %p359 = scmp.ne.s32.totalorder %s345, %s346
    %p360 = scmp.eq.s32.totalorder %s26, 1
    %p361 = por %p359, %p360
    %p363 = scmp.ne.s32.totalorder %s346, %s362
    %p364 = scmp.eq.s32.totalorder %s26, 0
    %p365 = por %p363, %p364
    %s366 = ssub.s32 %s20, %s27
    %p367 = scmp.eq.s32.totalorder %s366, 0
    %s369 = sadd.s32 %s368, 1
    %s370 = scalar_select %p367, %s368, %s369
    %p373 = pneg %p367
    %p374 = scmp.eq.s32.totalorder %s20, 1
    %p375 = por %p373, %p374
    %p376 = scmp.ne.s32.totalorder %s368, %s371
    %p377 = scmp.eq.s32.totalorder %s20, 0
    %p378 = por %p376, %p377
    %p379 = scmp.ne.s32.totalorder %s368, %s371
    %p380 = scmp.eq.s32.totalorder %s25, 1
    %p381 = por %p379, %p380
    %p382 = scmp.ne.s32.totalorder %s371, %s372
    %p383 = scmp.eq.s32.totalorder %s25, 0
    %p384 = por %p382, %p383
    %p385 = scmp.ne.s32.totalorder %s371, %s372
    %p386 = scmp.eq.s32.totalorder %s26, 1
    %p387 = por %p385, %p386
    %p389 = scmp.ne.s32.totalorder %s372, %s388
    %p390 = scmp.eq.s32.totalorder %s26, 0
    %p391 = por %p389, %p390
    %p392 = scmp.le.s32.totalorder 1, %s20
    %p393 = scmp.lt.s32.totalorder %s20, 3
    %p394 = pnand %p392, %p393
    %p395 = pneg %p394
    // Predicated region
    $region9: #{pdqp_net_forward.2} parent=5 // pred_check
      _
    $region10: #{pdqp_net_forward.2} parent=5 // pred_check_branch
      %397 = sbr.rel (%p394) target = $region12
    $region11: #{pdqp_net_forward.2} parent=5 // pred_region
      %s398 = ssub.s32 %s20, 1
    $region12: #{pdqp_net_forward.2} parent=5 // pred_fallthru
      _
    %p399 = scmp.lt.s32.totalorder %s20, 2
    // Predicated region
    $region13: #{pdqp_net_forward.2} parent=5 // pred_check
      %p400 = pneg %p399
    $region14: #{pdqp_net_forward.2} parent=5 // pred_check_branch
      %402 = sbr.rel (%p400) target = $region16
    $region15: #{pdqp_net_forward.2} parent=5 // pred_region
      // Predicated region
      $region17: #{pdqp_net_forward.2} parent=15 // pred_check
        %p403 = pneg %p40
      $region18: #{pdqp_net_forward.2} parent=15 // pred_check_branch
        %405 = sbr.rel (%p403) target = $region20
      $region19: #{pdqp_net_forward.2} parent=15 // pred_region
        %s406 = smul.u32 2, %s20
        %p407 = scmp.lt.s32.totalorder %s406, 3
        %s408 = scalar_select %p407, %s406, 3
        %s409 = smul.addr %s408, 4
        %s410 = scalar_lea.vmem %s0, %s409
        %s411 = smul.u32 2, %s20
      $region20: #{pdqp_net_forward.2} parent=15 // pred_fallthru
        _
      // Predicated region
      $region21: #{pdqp_net_forward.2} parent=15 // pred_check
        %p412 = pneg %p66
      $region22: #{pdqp_net_forward.2} parent=15 // pred_check_branch
        %414 = sbr.rel (%p412) target = $region24
      $region23: #{pdqp_net_forward.2} parent=15 // pred_region
        %s415 = smul.u32 2, %s20
        %p416 = scmp.lt.s32.totalorder %s415, 3
        %s417 = scalar_select %p416, %s415, 3
        %s418 = smul.addr %s417, 2
        %s419 = smul.addr %s418, 8
        %s420 = scalar_lea.vmem %s1, %s419
        %s421 = smul.u32 2, %s20
      $region24: #{pdqp_net_forward.2} parent=15 // pred_fallthru
        _
      // Predicated region
      $region25: #{pdqp_net_forward.2} parent=15 // pred_check
        %p422 = pneg %p92
      $region26: #{pdqp_net_forward.2} parent=15 // pred_check_branch
        %424 = sbr.rel (%p422) target = $region28
      $region27: #{pdqp_net_forward.2} parent=15 // pred_region
        %s425 = smul.u32 2, %s20
        %p426 = scmp.lt.s32.totalorder %s425, 3
        %s427 = scalar_select %p426, %s425, 3
        %s428 = smul.addr %s427, 2
        %s429 = smul.addr %s428, 8
        %s430 = scalar_lea.vmem %s2, %s429
        %s431 = smul.u32 2, %s20
      $region28: #{pdqp_net_forward.2} parent=15 // pred_fallthru
        _
      // Predicated region
      $region29: #{pdqp_net_forward.2} parent=15 // pred_check
        %p432 = pneg %p118
      $region30: #{pdqp_net_forward.2} parent=15 // pred_check_branch
        %434 = sbr.rel (%p432) target = $region32
      $region31: #{pdqp_net_forward.2} parent=15 // pred_region
        %s435 = smul.u32 2, %s20
        %p436 = scmp.lt.s32.totalorder %s435, 3
        %s437 = scalar_select %p436, %s435, 3
        %s438 = smul.addr %s437, 8
        %s439 = scalar_lea.vmem %s3, %s438
        %s440 = smul.u32 2, %s20
      $region32: #{pdqp_net_forward.2} parent=15 // pred_fallthru
        _
      // Predicated region
      $region33: #{pdqp_net_forward.2} parent=15 // pred_check
        %p441 = pneg %p144
      $region34: #{pdqp_net_forward.2} parent=15 // pred_check_branch
        %443 = sbr.rel (%p441) target = $region36
      $region35: #{pdqp_net_forward.2} parent=15 // pred_region
        %s444 = smul.u32 2, %s20
        %p445 = scmp.lt.s32.totalorder %s444, 3
        %s446 = scalar_select %p445, %s444, 3
        %s447 = smul.addr %s446, 2
        %s448 = smul.addr %s447, 8
        %s449 = scalar_lea.vmem %s4, %s448
        %s450 = smul.u32 2, %s20
      $region36: #{pdqp_net_forward.2} parent=15 // pred_fallthru
        _
      // Predicated region
      $region37: #{pdqp_net_forward.2} parent=15 // pred_check
        %p451 = pneg %p170
      $region38: #{pdqp_net_forward.2} parent=15 // pred_check_branch
        %453 = sbr.rel (%p451) target = $region40
      $region39: #{pdqp_net_forward.2} parent=15 // pred_region
        %s454 = smul.u32 2, %s20
        %p455 = scmp.lt.s32.totalorder %s454, 3
        %s456 = scalar_select %p455, %s454, 3
        %s457 = smul.addr %s456, 8
        %s458 = scalar_lea.vmem %s5, %s457
        %s459 = smul.u32 2, %s20
      $region40: #{pdqp_net_forward.2} parent=15 // pred_fallthru
        _
      // Predicated region
      $region41: #{pdqp_net_forward.2} parent=15 // pred_check
        %p460 = pneg %p196
      $region42: #{pdqp_net_forward.2} parent=15 // pred_check_branch
        %462 = sbr.rel (%p460) target = $region44
      $region43: #{pdqp_net_forward.2} parent=15 // pred_region
        %s463 = smul.u32 2, %s20
        %p464 = scmp.lt.s32.totalorder %s463, 3
        %s465 = scalar_select %p464, %s463, 3
        %s466 = smul.addr %s465, 2
        %s467 = smul.addr %s466, 8
        %s468 = scalar_lea.vmem %s6, %s467
        %s469 = smul.u32 2, %s20
      $region44: #{pdqp_net_forward.2} parent=15 // pred_fallthru
        _
      // Predicated region
      $region45: #{pdqp_net_forward.2} parent=15 // pred_check
        %p470 = pneg %p222
      $region46: #{pdqp_net_forward.2} parent=15 // pred_check_branch
        %472 = sbr.rel (%p470) target = $region48
      $region47: #{pdqp_net_forward.2} parent=15 // pred_region
        %s473 = smul.u32 2, %s20
        %p474 = scmp.lt.s32.totalorder %s473, 3
        %s475 = scalar_select %p474, %s473, 3
        %s476 = smul.addr %s475, 2
        %s477 = smul.addr %s476, 8
        %s478 = scalar_lea.vmem %s7, %s477
        %s479 = smul.u32 2, %s20
      $region48: #{pdqp_net_forward.2} parent=15 // pred_fallthru
        _
      // Predicated region
      $region49: #{pdqp_net_forward.2} parent=15 // pred_check
        %p480 = pneg %p248
      $region50: #{pdqp_net_forward.2} parent=15 // pred_check_branch
        %482 = sbr.rel (%p480) target = $region52
      $region51: #{pdqp_net_forward.2} parent=15 // pred_region
        %s483 = smul.u32 2, %s20
        %p484 = scmp.lt.s32.totalorder %s483, 3
        %s485 = scalar_select %p484, %s483, 3
        %s486 = smul.addr %s485, 2
        %s487 = smul.addr %s486, 8
        %s488 = scalar_lea.vmem %s8, %s487
        %s489 = smul.u32 2, %s20
      $region52: #{pdqp_net_forward.2} parent=15 // pred_fallthru
        _
      // Predicated region
      $region53: #{pdqp_net_forward.2} parent=15 // pred_check
        %p490 = pneg %p274
      $region54: #{pdqp_net_forward.2} parent=15 // pred_check_branch
        %492 = sbr.rel (%p490) target = $region56
      $region55: #{pdqp_net_forward.2} parent=15 // pred_region
        %s493 = smul.u32 2, %s20
        %p494 = scmp.lt.s32.totalorder %s493, 3
        %s495 = scalar_select %p494, %s493, 3
        %s496 = smul.addr %s495, 4
        %s497 = smul.addr %s496, 8
        %s498 = scalar_lea.vmem %s9, %s497
        %s499 = smul.u32 2, %s20
      $region56: #{pdqp_net_forward.2} parent=15 // pred_fallthru
        _
      // Predicated region
      $region57: #{pdqp_net_forward.2} parent=15 // pred_check
        %p500 = pneg %p300
      $region58: #{pdqp_net_forward.2} parent=15 // pred_check_branch
        %502 = sbr.rel (%p500) target = $region60
      $region59: #{pdqp_net_forward.2} parent=15 // pred_region
        %s503 = smul.u32 2, %s20
        %p504 = scmp.lt.s32.totalorder %s503, 3
        %s505 = scalar_select %p504, %s503, 3
        %s506 = smul.addr %s505, 4
        %s507 = smul.addr %s506, 8
        %s508 = scalar_lea.vmem %s10, %s507
        %s509 = smul.u32 2, %s20
      $region60: #{pdqp_net_forward.2} parent=15 // pred_fallthru
        _
    $region16: #{pdqp_net_forward.2} parent=5 // pred_fallthru
      _
    %p510 = scmp.le.s32.totalorder 1, %s20
    %p511 = scmp.lt.s32.totalorder %s20, 3
    %p512 = pnand %p510, %p511
    %p513 = pneg %p512
    // Predicated region
    $region61: #{pdqp_net_forward.2} parent=5 // pred_check
      _
    $region62: #{pdqp_net_forward.2} parent=5 // pred_check_branch
      %515 = sbr.rel (%p512) target = $region64
    $region63: #{pdqp_net_forward.2} parent=5 // pred_region
      %s516 = ssub.s32 %s20, 1
      %s517 = smul.u32 2, %s25
      %p518 = scmp.lt.s32.totalorder %s517, 3
      %s519 = scalar_select %p518, %s517, 3
      %s520 = smul.addr %s519, 4
      %s521 = scalar_lea.vmem %s0, %s520
      %p522 = pneg %p46
      %p523 = pneg %p43
      %s524 = smul.u32 2, %s25
      %p525 = scmp.lt.s32.totalorder %s524, 3
      %s526 = scalar_select %p525, %s524, 3
      %s527 = smul.addr %s526, 2
      %s528 = smul.addr %s527, 8
      %s529 = scalar_lea.vmem %s1, %s528
      %p530 = pneg %p72
      %p531 = pneg %p69
      %s532 = smul.u32 2, %s25
      %p533 = scmp.lt.s32.totalorder %s532, 3
      %s534 = scalar_select %p533, %s532, 3
      %s535 = smul.addr %s534, 2
      %s536 = smul.addr %s535, 8
      %s537 = scalar_lea.vmem %s2, %s536
      %p538 = pneg %p98
      %p539 = pneg %p95
      %s540 = smul.u32 2, %s25
      %p541 = scmp.lt.s32.totalorder %s540, 3
      %s542 = scalar_select %p541, %s540, 3
      %s543 = smul.addr %s542, 8
      %s544 = scalar_lea.vmem %s3, %s543
      %p545 = pneg %p124
      %p546 = pneg %p121
      %s547 = smul.u32 2, %s25
      %p548 = scmp.lt.s32.totalorder %s547, 3
      %s549 = scalar_select %p548, %s547, 3
      %s550 = smul.addr %s549, 2
      %s551 = smul.addr %s550, 8
      %s552 = scalar_lea.vmem %s4, %s551
      %p553 = pneg %p150
      %p554 = pneg %p147
      %s555 = smul.u32 2, %s25
      %p556 = scmp.lt.s32.totalorder %s555, 3
      %s557 = scalar_select %p556, %s555, 3
      %s558 = smul.addr %s557, 8
      %s559 = scalar_lea.vmem %s5, %s558
      %p560 = pneg %p176
      %p561 = pneg %p173
      %s562 = smul.u32 2, %s25
      %p563 = scmp.lt.s32.totalorder %s562, 3
      %s564 = scalar_select %p563, %s562, 3
      %s565 = smul.addr %s564, 2
      %s566 = smul.addr %s565, 8
      %s567 = scalar_lea.vmem %s6, %s566
      %p568 = pneg %p202
      %p569 = pneg %p199
      %s570 = smul.u32 2, %s25
      %p571 = scmp.lt.s32.totalorder %s570, 3
      %s572 = scalar_select %p571, %s570, 3
      %s573 = smul.addr %s572, 2
      %s574 = smul.addr %s573, 8
      %s575 = scalar_lea.vmem %s7, %s574
      %p576 = pneg %p228
      %p577 = pneg %p225
      %s578 = smul.u32 2, %s25
      %p579 = scmp.lt.s32.totalorder %s578, 3
      %s580 = scalar_select %p579, %s578, 3
      %s581 = smul.addr %s580, 2
      %s582 = smul.addr %s581, 8
      %s583 = scalar_lea.vmem %s8, %s582
      %p584 = pneg %p254
      %p585 = pneg %p251
      %s586 = smul.u32 2, %s25
      %p587 = scmp.lt.s32.totalorder %s586, 3
      %s588 = scalar_select %p587, %s586, 3
      %s589 = smul.addr %s588, 4
      %s590 = smul.addr %s589, 8
      %s591 = scalar_lea.vmem %s9, %s590
      %p592 = pneg %p280
      %p593 = pneg %p277
      %s594 = smul.u32 2, %s25
      %p595 = scmp.lt.s32.totalorder %s594, 3
      %s596 = scalar_select %p595, %s594, 3
      %s597 = smul.addr %s596, 4
      %s598 = smul.addr %s597, 8
      %s599 = scalar_lea.vmem %s10, %s598
      %p600 = pneg %p306
      %p601 = pneg %p303
      %p602 = pneg %p332
      %p603 = pneg %p329
      %s604 = smul.u32 2, %s25
      %p605 = scmp.lt.s32.totalorder %s604, 3
      %s606 = scalar_select %p605, %s604, 3
      %s607 = smul.addr %s606, 2
      %s608 = smul.addr %s607, 8
      %s609 = scalar_lea.vmem %s11, %s608
      %p610 = pneg %p358
      %p611 = pneg %p355
      %s612 = smul.u32 2, %s25
      %p613 = scmp.lt.s32.totalorder %s612, 3
      %s614 = scalar_select %p613, %s612, 3
      %s615 = smul.addr %s614, 2
      %s616 = smul.addr %s615, 8
      %s617 = scalar_lea.vmem %s12, %s616
      %p618 = pneg %p384
      %p619 = pneg %p381
      %s620 = smul.u32 2, %s25
      %p621 = scmp.lt.s32.totalorder %s620, 3
      %s622 = scalar_select %p621, %s620, 3
      %s623 = smul.addr %s622, 8
      %s624 = scalar_lea.vmem %s13, %s623
      %s625 = smul.u32 2, %s25
      %p626 = scmp.lt.s32.totalorder %s625, 3
      %s627 = scalar_select %p626, %s625, 3
      %s628 = smul.addr %s627, 4
      %s629 = scalar_lea.vmem %s0, %s628
      %s630 = smul.u32 2, %s25
      %s631 = smul.u32 2, %s25
      %p632 = scmp.lt.s32.totalorder %s631, 3
      %s633 = scalar_select %p632, %s631, 3
      %s634 = smul.addr %s633, 2
      %s635 = smul.addr %s634, 8
      %s636 = scalar_lea.vmem %s1, %s635
      %s637 = smul.u32 2, %s25
      %s638 = smul.u32 2, %s25
      %p639 = scmp.lt.s32.totalorder %s638, 3
      %s640 = scalar_select %p639, %s638, 3
      %s641 = smul.addr %s640, 2
      %s642 = smul.addr %s641, 8
      %s643 = scalar_lea.vmem %s2, %s642
      %s644 = smul.u32 2, %s25
      %s645 = smul.u32 2, %s25
      %p646 = scmp.lt.s32.totalorder %s645, 3
      %s647 = scalar_select %p646, %s645, 3
      %s648 = smul.addr %s647, 8
      %s649 = scalar_lea.vmem %s3, %s648
      %s650 = smul.u32 2, %s25
      %s651 = smul.u32 2, %s25
      %p652 = scmp.lt.s32.totalorder %s651, 3
      %s653 = scalar_select %p652, %s651, 3
      %s654 = smul.addr %s653, 2
      %s655 = smul.addr %s654, 8
      %s656 = scalar_lea.vmem %s4, %s655
      %s657 = smul.u32 2, %s25
      %s658 = smul.u32 2, %s25
      %p659 = scmp.lt.s32.totalorder %s658, 3
      %s660 = scalar_select %p659, %s658, 3
      %s661 = smul.addr %s660, 8
      %s662 = scalar_lea.vmem %s5, %s661
      %s663 = smul.u32 2, %s25
      %s664 = smul.u32 2, %s25
      %p665 = scmp.lt.s32.totalorder %s664, 3
      %s666 = scalar_select %p665, %s664, 3
      %s667 = smul.addr %s666, 2
      %s668 = smul.addr %s667, 8
      %s669 = scalar_lea.vmem %s6, %s668
      %s670 = smul.u32 2, %s25
      %s671 = smul.u32 2, %s25
      %p672 = scmp.lt.s32.totalorder %s671, 3
      %s673 = scalar_select %p672, %s671, 3
      %s674 = smul.addr %s673, 2
      %s675 = smul.addr %s674, 8
      %s676 = scalar_lea.vmem %s7, %s675
      %s677 = smul.u32 2, %s25
      %s678 = smul.u32 2, %s25
      %p679 = scmp.lt.s32.totalorder %s678, 3
      %s680 = scalar_select %p679, %s678, 3
      %s681 = smul.addr %s680, 2
      %s682 = smul.addr %s681, 8
      %s683 = scalar_lea.vmem %s8, %s682
      %s684 = smul.u32 2, %s25
      %s685 = smul.u32 2, %s25
      %p686 = scmp.lt.s32.totalorder %s685, 3
      %s687 = scalar_select %p686, %s685, 3
      %s688 = smul.addr %s687, 4
      %s689 = smul.addr %s688, 8
      %s690 = scalar_lea.vmem %s9, %s689
      %s691 = smul.u32 2, %s25
      %s692 = smul.u32 2, %s25
      %p693 = scmp.lt.s32.totalorder %s692, 3
      %s694 = scalar_select %p693, %s692, 3
      %s695 = smul.addr %s694, 4
      %s696 = smul.addr %s695, 8
      %s697 = scalar_lea.vmem %s10, %s696
      %s698 = smul.u32 2, %s25
      %s699 = smul.u32 2, %s25
      %p700 = scmp.lt.s32.totalorder %s699, 3
      %s701 = scalar_select %p700, %s699, 3
      %s702 = smul.addr %s701, 2
      %s703 = smul.addr %s702, 8
      %s704 = scalar_lea.vmem %s11, %s703
      %s705 = smul.u32 2, %s25
      %s706 = smul.u32 2, %s25
      %p707 = scmp.lt.s32.totalorder %s706, 3
      %s708 = scalar_select %p707, %s706, 3
      %s709 = smul.addr %s708, 2
      %s710 = smul.addr %s709, 8
      %s711 = scalar_lea.vmem %s12, %s710
      %s712 = smul.u32 2, %s25
      %s713 = smul.u32 2, %s25
      %p714 = scmp.lt.s32.totalorder %s713, 3
      %s715 = scalar_select %p714, %s713, 3
      %s716 = smul.addr %s715, 8
      %s717 = scalar_lea.vmem %s13, %s716
      %s718 = smul.u32 2, %s25
      %v719 = vld [vmem:[%s629] sm:$0xf]
      %v720 = vld [vmem:[%s629 + $0x4] sm:$0xf]
      %v721 = vld [vmem:[%s636] sm:$0xff]
      %v722 = vld [vmem:[%s636 + $0x8] sm:$0xff]
      %v723 = vld [vmem:[%s636 + $0x10] sm:$0xff]
      %v724 = vld [vmem:[%s636 + $0x18] sm:$0xff]
      %v725 = vld [vmem:[%s643] sm:$0xff]
      %v726 = vld [vmem:[%s643 + $0x8] sm:$0xff]
      %v727 = vld [vmem:[%s643 + $0x10] sm:$0xff]
      %v728 = vld [vmem:[%s643 + $0x18] sm:$0xff]
      %v729 = vsub.f32 1.0, %v719
      %v730 = vsub.f32 1.0, %v720
      %v733 = vrot.slane %v729, 1
      %v734 = vrot.slane %v730, 1
      %s735 = vtos %v733
      %v736 = vstv %s735
      %s738 = vtos %v734
      %v739 = vstv %s738
      %v741 = vmul.f32 %v736, %v725
      %v742 = vmul.f32 %v736, %v726
      %v743 = vmul.f32 %v739, %v727
      %v744 = vmul.f32 %v739, %v728
      %v747 = vrot.slane %v719, 1
      %v748 = vrot.slane %v720, 1
      %s749 = vtos %v747
      %v750 = vstv %s749
      %s752 = vtos %v748
      %v753 = vstv %s752
      %v755 = vmul.f32 %v750, %v721
      %v756 = vmul.f32 %v750, %v722
      %v757 = vmul.f32 %v753, %v723
      %v758 = vmul.f32 %v753, %v724
      %v759 = vadd.f32 %v741, %v755
      %v760 = vadd.f32 %v742, %v756
      %v761 = vadd.f32 %v743, %v757
      %v762 = vadd.f32 %v744, %v758
      %v763 = vld [vmem:[%s656] sm:$0xff]
      %v764 = vld [vmem:[%s656 + $0x8] sm:$0xff]
      %v765 = vld [vmem:[%s656 + $0x10] sm:$0xff]
      %v766 = vld [vmem:[%s656 + $0x18] sm:$0xff]
      %vm767 = vcmask 130048
      %v769 = vsel %vm767, %v763, 0
      %v772 = vsel %vm767, %v764, 0
      %774 = vmatpush.msra.mxu0 0.0
      %775 = vmatpush.msra.mxu0 0.0
      %776 = vmatpush.msra.mxu0 0.0
      %777 = vmatpush.msra.mxu0 0.0
      %778 = vmatpush.msra.mxu0 0.0
      %779 = vmatpush.msra.mxu0 0.0
      %780 = vmatpush.msra.mxu0 0.0
      %781 = vmatpush.msra.mxu0 0.0
      %782 = vmatpush.msra.mxu0 0.0
      %783 = vmatpush.msra.mxu0 0.0
      %784 = vmatpush.msra.mxu0 0.0
      %785 = vmatpush.msra.mxu0 0.0
      %786 = vmatpush.msra.mxu0 0.0
      %787 = vmatpush.msra.mxu0 0.0
      %788 = vmatpush.msra.mxu0 %v760
      %789 = vmatpush.msra.mxu0 %v759
      %790 = vmatmul.f32.gmra.mxu0 %v769
      %v791 = vpop.f32.mrf.mxu0
      %v792 = vadd.f32 0.0, %v791
      %793 = vmatmul.f32.gmra.mxu0 %v772
      %v794 = vpop.f32.mrf.mxu0
      %v795 = vadd.f32 0.0, %v794
      %796 = vdwg.mxu0
      %v798 = vsel %vm767, %v765, 0
      %v801 = vsel %vm767, %v766, 0
      %803 = vmatpush.msra.mxu0 0.0
      %804 = vmatpush.msra.mxu0 0.0
      %805 = vmatpush.msra.mxu0 0.0
      %806 = vmatpush.msra.mxu0 0.0
      %807 = vmatpush.msra.mxu0 0.0
      %808 = vmatpush.msra.mxu0 0.0
      %809 = vmatpush.msra.mxu0 0.0
      %810 = vmatpush.msra.mxu0 0.0
      %811 = vmatpush.msra.mxu0 0.0
      %812 = vmatpush.msra.mxu0 0.0
      %813 = vmatpush.msra.mxu0 0.0
      %814 = vmatpush.msra.mxu0 0.0
      %815 = vmatpush.msra.mxu0 0.0
      %816 = vmatpush.msra.mxu0 0.0
      %817 = vmatpush.msra.mxu0 %v762
      %818 = vmatpush.msra.mxu0 %v761
      %819 = vmatmul.f32.gmra.mxu0 %v798
      %v820 = vpop.f32.mrf.mxu0
      %v821 = vadd.f32 0.0, %v820
      %822 = vmatmul.f32.gmra.mxu0 %v801
      %v823 = vpop.f32.mrf.mxu0
      %v824 = vadd.f32 0.0, %v823
      %825 = vdwg.mxu0
      %v826 = vld [vmem:[%s690] sm:$0xff]
      %v827 = vld [vmem:[%s690 + $0x8] sm:$0xff]
      %v828 = vld [vmem:[%s690 + $0x10] sm:$0xff]
      %v829 = vld [vmem:[%s690 + $0x18] sm:$0xff]
      %v830 = vld [vmem:[%s690 + $0x20] sm:$0xff]
      %v831 = vld [vmem:[%s690 + $0x28] sm:$0xff]
      %v832 = vld [vmem:[%s690 + $0x30] sm:$0xff]
      %v833 = vld [vmem:[%s690 + $0x38] sm:$0xff]
      %v834 = vld [vmem:[%s669] sm:$0xff]
      %v835 = vld [vmem:[%s669 + $0x8] sm:$0xff]
      %v836 = vld [vmem:[%s669 + $0x10] sm:$0xff]
      %v837 = vld [vmem:[%s669 + $0x18] sm:$0xff]
      %839 = vset.pattern.permute.xlu0 0
      %840 = vperm.xlu0 %839, %v834
      %v841 = vpop.permute.xlu0 %840
      %844 = vset.pattern.permute.xlu0 0
      %845 = vperm.xlu0 %844, %v835
      %v846 = vpop.permute.xlu0 %845
      %849 = vset.pattern.permute.xlu0 0
      %850 = vperm.xlu0 %849, %v836
      %v851 = vpop.permute.xlu0 %850
      %854 = vset.pattern.permute.xlu0 0
      %855 = vperm.xlu0 %854, %v837
      %v856 = vpop.permute.xlu0 %855
      %vm858 = vcmask 261120
      %v860 = vsel %vm858, %v792, 0
      %v863 = vsel %vm858, %v795, 0
      %865 = vmatpush.msra.mxu0 0.0
      %866 = vmatpush.msra.mxu0 0.0
      %867 = vmatpush.msra.mxu0 0.0
      %868 = vmatpush.msra.mxu0 0.0
      %869 = vmatpush.msra.mxu0 0.0
      %870 = vmatpush.msra.mxu0 0.0
      %871 = vmatpush.msra.mxu0 0.0
      %872 = vmatpush.msra.mxu0 0.0
      %873 = vmatpush.msra.mxu0 0.0
      %874 = vmatpush.msra.mxu0 0.0
      %875 = vmatpush.msra.mxu0 0.0
      %876 = vmatpush.msra.mxu0 0.0
      %877 = vmatpush.msra.mxu0 %v829
      %878 = vmatpush.msra.mxu0 %v828
      %879 = vmatpush.msra.mxu0 %v827
      %880 = vmatpush.msra.mxu0 %v826
      %881 = vmatmul.f32.gmra.mxu0 %v860
      %v882 = vpop.f32.mrf.mxu0
      %v883 = vadd.f32 %v841, %v882
      %884 = vmatmul.f32.gmra.mxu0 %v863
      %v885 = vpop.f32.mrf.mxu0
      %v886 = vadd.f32 %v846, %v885
      %887 = vdwg.mxu0
      %v889 = vsel %vm858, %v821, 0
      %v892 = vsel %vm858, %v824, 0
      %894 = vmatpush.msra.mxu0 0.0
      %895 = vmatpush.msra.mxu0 0.0
      %896 = vmatpush.msra.mxu0 0.0
      %897 = vmatpush.msra.mxu0 0.0
      %898 = vmatpush.msra.mxu0 0.0
      %899 = vmatpush.msra.mxu0 0.0
      %900 = vmatpush.msra.mxu0 0.0
      %901 = vmatpush.msra.mxu0 0.0
      %902 = vmatpush.msra.mxu0 0.0
      %903 = vmatpush.msra.mxu0 0.0
      %904 = vmatpush.msra.mxu0 0.0
      %905 = vmatpush.msra.mxu0 0.0
      %906 = vmatpush.msra.mxu0 %v833
      %907 = vmatpush.msra.mxu0 %v832
      %908 = vmatpush.msra.mxu0 %v831
      %909 = vmatpush.msra.mxu0 %v830
      %910 = vmatmul.f32.gmra.mxu0 %v889
      %v911 = vpop.f32.mrf.mxu0
      %v912 = vadd.f32 %v851, %v911
      %913 = vmatmul.f32.gmra.mxu0 %v892
      %v914 = vpop.f32.mrf.mxu0
      %v915 = vadd.f32 %v856, %v914
      %916 = vdwg.mxu0
      %s917 = vtos %v719
      %v918 = vstv %s917
      %s920 = vtos %v720
      %v921 = vstv %s920
      %v923 = vmul.f32 %v918, %v883
      %v924 = vmul.f32 %v918, %v886
      %v925 = vmul.f32 %v921, %v912
      %v926 = vmul.f32 %v921, %v915
      %v927 = vmul.f32 %v923, 0.001953125
      %v928 = vmul.f32 %v924, 0.001953125
      %v929 = vmul.f32 %v925, 0.001953125
      %v930 = vmul.f32 %v926, 0.001953125
      %v931 = vsub.f32 %v721, %v927
      %v932 = vsub.f32 %v722, %v928
      %v933 = vsub.f32 %v723, %v929
      %v934 = vsub.f32 %v724, %v930
      %v935 = vld [vmem:[%s676] sm:$0xff]
      %v936 = vld [vmem:[%s676 + $0x8] sm:$0xff]
      %v937 = vld [vmem:[%s676 + $0x10] sm:$0xff]
      %v938 = vld [vmem:[%s676 + $0x18] sm:$0xff]
      %v939 = vld [vmem:[%s683] sm:$0xff]
      %v940 = vld [vmem:[%s683 + $0x8] sm:$0xff]
      %v941 = vld [vmem:[%s683 + $0x10] sm:$0xff]
      %v942 = vld [vmem:[%s683 + $0x18] sm:$0xff]
      %944 = vset.pattern.permute.xlu0 0
      %945 = vperm.xlu0 %944, %v935
      %v946 = vpop.permute.xlu0 %945
      %949 = vset.pattern.permute.xlu0 0
      %950 = vperm.xlu0 %949, %v936
      %v951 = vpop.permute.xlu0 %950
      %954 = vset.pattern.permute.xlu0 0
      %955 = vperm.xlu0 %954, %v937
      %v956 = vpop.permute.xlu0 %955
      %959 = vset.pattern.permute.xlu0 0
      %960 = vperm.xlu0 %959, %v938
      %v961 = vpop.permute.xlu0 %960
      %v963 = vmax.f32 %v946, %v931
      %v964 = vmax.f32 %v951, %v932
      %v965 = vmax.f32 %v956, %v933
      %v966 = vmax.f32 %v961, %v934
      %968 = vset.pattern.permute.xlu0 0
      %969 = vperm.xlu0 %968, %v939
      %v970 = vpop.permute.xlu0 %969
      %973 = vset.pattern.permute.xlu0 0
      %974 = vperm.xlu0 %973, %v940
      %v975 = vpop.permute.xlu0 %974
      %978 = vset.pattern.permute.xlu0 0
      %979 = vperm.xlu0 %978, %v941
      %v980 = vpop.permute.xlu0 %979
      %983 = vset.pattern.permute.xlu0 0
      %984 = vperm.xlu0 %983, %v942
      %v985 = vpop.permute.xlu0 %984
      %v987 = vmin.f32 %v970, %v963
      %v988 = vmin.f32 %v975, %v964
      %v989 = vmin.f32 %v980, %v965
      %v990 = vmin.f32 %v985, %v966
      %v991 = vmul.f32 %v750, %v987
      %v992 = vmul.f32 %v750, %v988
      %v993 = vmul.f32 %v753, %v989
      %v994 = vmul.f32 %v753, %v990
      %v995 = vadd.f32 %v741, %v991
      %v996 = vadd.f32 %v742, %v992
      %v997 = vadd.f32 %v743, %v993
      %v998 = vadd.f32 %v744, %v994
      %999 = vst.msk [vmem:[%s704] sm:$0xff] %vm858, %v987
      %1000 = vst.msk [vmem:[%s704 + $0x8] sm:$0xff] %vm858, %v988
      %1001 = vst.msk [vmem:[%s704 + $0x10] sm:$0xff] %vm858, %v989
      %1002 = vst.msk [vmem:[%s704 + $0x18] sm:$0xff] %vm858, %v990
      %1003 = vst.msk [vmem:[%s711] sm:$0xff] %vm858, %v995
      %1004 = vst.msk [vmem:[%s711 + $0x8] sm:$0xff] %vm858, %v996
      %1005 = vst.msk [vmem:[%s711 + $0x10] sm:$0xff] %vm858, %v997
      %1006 = vst.msk [vmem:[%s711 + $0x18] sm:$0xff] %vm858, %v998
      %v1007 = vsub.f32 %v987, %v721
      %v1008 = vsub.f32 %v988, %v722
      %v1009 = vsub.f32 %v989, %v723
      %v1010 = vsub.f32 %v990, %v724
      %v1011 = vrot.slane %v719, 3
      %v1012 = vrot.slane %v720, 3
      %s1013 = vtos %v1011
      %v1014 = vstv %s1013
      %s1016 = vtos %v1012
      %v1017 = vstv %s1016
      %v1019 = vmul.f32 %v1014, %v1007
      %v1020 = vmul.f32 %v1014, %v1008
      %v1021 = vmul.f32 %v1017, %v1009
      %v1022 = vmul.f32 %v1017, %v1010
      %v1023 = vadd.f32 %v1019, %v987
      %v1024 = vadd.f32 %v1020, %v988
      %v1025 = vadd.f32 %v1021, %v989
      %v1026 = vadd.f32 %v1022, %v990
      %v1027 = vld [vmem:[%s662] sm:$0xff]
      %v1028 = vld [vmem:[%s662 + $0x8] sm:$0xff]
      %v1030 = vsel %vm767, %v1027, 0
      %1032 = vmatpush.msra.mxu0 0.0
      %1033 = vmatpush.msra.mxu0 0.0
      %1034 = vmatpush.msra.mxu0 0.0
      %1035 = vmatpush.msra.mxu0 0.0
      %1036 = vmatpush.msra.mxu0 0.0
      %1037 = vmatpush.msra.mxu0 0.0
      %1038 = vmatpush.msra.mxu0 0.0
      %1039 = vmatpush.msra.mxu0 0.0
      %1040 = vmatpush.msra.mxu0 0.0
      %1041 = vmatpush.msra.mxu0 0.0
      %1042 = vmatpush.msra.mxu0 0.0
      %1043 = vmatpush.msra.mxu0 0.0
      %1044 = vmatpush.msra.mxu0 0.0
      %1045 = vmatpush.msra.mxu0 0.0
      %1046 = vmatpush.msra.mxu0 %v1024
      %1047 = vmatpush.msra.mxu0 %v1023
      %1048 = vmatmul.f32.gmra.mxu0 %v1030
      %v1049 = vpop.f32.mrf.mxu0
      %v1050 = vadd.f32 0.0, %v1049
      %1051 = vdwg.mxu0
      %v1053 = vsel %vm767, %v1028, 0
      %1055 = vmatpush.msra.mxu0 0.0
      %1056 = vmatpush.msra.mxu0 0.0
      %1057 = vmatpush.msra.mxu0 0.0
      %1058 = vmatpush.msra.mxu0 0.0
      %1059 = vmatpush.msra.mxu0 0.0
      %1060 = vmatpush.msra.mxu0 0.0
      %1061 = vmatpush.msra.mxu0 0.0
      %1062 = vmatpush.msra.mxu0 0.0
      %1063 = vmatpush.msra.mxu0 0.0
      %1064 = vmatpush.msra.mxu0 0.0
      %1065 = vmatpush.msra.mxu0 0.0
      %1066 = vmatpush.msra.mxu0 0.0
      %1067 = vmatpush.msra.mxu0 0.0
      %1068 = vmatpush.msra.mxu0 0.0
      %1069 = vmatpush.msra.mxu0 %v1026
      %1070 = vmatpush.msra.mxu0 %v1025
      %1071 = vmatmul.f32.gmra.mxu0 %v1053
      %v1072 = vpop.f32.mrf.mxu0
      %v1073 = vadd.f32 0.0, %v1072
      %1074 = vdwg.mxu0
      %v1075 = vld [vmem:[%s697] sm:$0xff]
      %v1076 = vld [vmem:[%s697 + $0x8] sm:$0xff]
      %v1077 = vld [vmem:[%s697 + $0x10] sm:$0xff]
      %v1078 = vld [vmem:[%s697 + $0x18] sm:$0xff]
      %v1079 = vld [vmem:[%s697 + $0x20] sm:$0xff]
      %v1080 = vld [vmem:[%s697 + $0x28] sm:$0xff]
      %v1081 = vld [vmem:[%s697 + $0x30] sm:$0xff]
      %v1082 = vld [vmem:[%s697 + $0x38] sm:$0xff]
      %v1084 = vsel %vm858, %v1050, 0
      %1086 = vmatpush.msra.mxu0 0.0
      %1087 = vmatpush.msra.mxu0 0.0
      %1088 = vmatpush.msra.mxu0 0.0
      %1089 = vmatpush.msra.mxu0 0.0
      %1090 = vmatpush.msra.mxu0 0.0
      %1091 = vmatpush.msra.mxu0 0.0
      %1092 = vmatpush.msra.mxu0 0.0
      %1093 = vmatpush.msra.mxu0 0.0
      %1094 = vmatpush.msra.mxu0 0.0
      %1095 = vmatpush.msra.mxu0 0.0
      %1096 = vmatpush.msra.mxu0 0.0
      %1097 = vmatpush.msra.mxu0 0.0
      %1098 = vmatpush.msra.mxu0 %v1078
      %1099 = vmatpush.msra.mxu0 %v1077
      %1100 = vmatpush.msra.mxu0 %v1076
      %1101 = vmatpush.msra.mxu0 %v1075
      %1102 = vmatmul.f32.gmra.mxu0 %v1084
      %v1103 = vpop.f32.mrf.mxu0
      %v1104 = vadd.f32 0.0, %v1103
      %1105 = vdwg.mxu0
      %v1107 = vsel %vm858, %v1073, 0
      %1109 = vmatpush.msra.mxu0 0.0
      %1110 = vmatpush.msra.mxu0 0.0
      %1111 = vmatpush.msra.mxu0 0.0
      %1112 = vmatpush.msra.mxu0 0.0
      %1113 = vmatpush.msra.mxu0 0.0
      %1114 = vmatpush.msra.mxu0 0.0
      %1115 = vmatpush.msra.mxu0 0.0
      %1116 = vmatpush.msra.mxu0 0.0
      %1117 = vmatpush.msra.mxu0 0.0
      %1118 = vmatpush.msra.mxu0 0.0
      %1119 = vmatpush.msra.mxu0 0.0
      %1120 = vmatpush.msra.mxu0 0.0
      %1121 = vmatpush.msra.mxu0 %v1082
      %1122 = vmatpush.msra.mxu0 %v1081
      %1123 = vmatpush.msra.mxu0 %v1080
      %1124 = vmatpush.msra.mxu0 %v1079
      %1125 = vmatmul.f32.gmra.mxu0 %v1107
      %v1126 = vpop.f32.mrf.mxu0
      %v1127 = vadd.f32 0.0, %v1126
      %1128 = vdwg.mxu0
      %v1129 = vld [vmem:[%s649] sm:$0xff]
      %v1130 = vld [vmem:[%s649 + $0x8] sm:$0xff]
      %v1131 = vrot.slane %v719, 2
      %v1132 = vrot.slane %v720, 2
      %s1133 = vtos %v1131
      %v1134 = vstv %s1133
      %s1136 = vtos %v1132
      %v1137 = vstv %s1136
      %v1139 = vmul.f32 %v1134, %v1104
      %v1140 = vmul.f32 %v1137, %v1127
      %v1141 = vsub.f32 %v1129, %v1139
      %v1142 = vsub.f32 %v1130, %v1140
      %v1143 = vmax.f32 %v1141, 0.0
      %v1144 = vmax.f32 %v1142, 0.0
      %1145 = vst.msk [vmem:[%s717] sm:$0xff] %vm858, %v1143
      %1146 = vst.msk [vmem:[%s717 + $0x8] sm:$0xff] %vm858, %v1144
      %s1147 = smul.u32 2, %s25
      %p1148 = scmp.lt.s32.totalorder %s1147, 3
      %s1149 = scalar_select %p1148, %s1147, 3
      %s1150 = smul.addr %s1149, 2
      %s1151 = smul.addr %s1150, 8
      %s1152 = scalar_lea.vmem %s11, %s1151
      %s1153 = smul.u32 2, %s25
      %p1154 = scmp.lt.s32.totalorder %s1153, 3
      %s1155 = scalar_select %p1154, %s1153, 3
      %s1156 = smul.addr %s1155, 2
      %s1157 = smul.addr %s1156, 8
      %s1158 = scalar_lea.vmem %s12, %s1157
      %s1159 = smul.u32 2, %s25
      %p1160 = scmp.lt.s32.totalorder %s1159, 3
      %s1161 = scalar_select %p1160, %s1159, 3
      %s1162 = smul.addr %s1161, 8
      %s1163 = scalar_lea.vmem %s13, %s1162
      // Predicated region
      $region65: #{pdqp_net_forward.2} parent=63 // pred_check
        %p1164 = pneg %p329
      $region66: #{pdqp_net_forward.2} parent=63 // pred_check_branch
        %1166 = sbr.rel (%p1164) target = $region68
      $region67: #{pdqp_net_forward.2} parent=63 // pred_region
        %s1167 = smul.u32 2, %s25
      $region68: #{pdqp_net_forward.2} parent=63 // pred_fallthru
        _
      // Predicated region
      $region69: #{pdqp_net_forward.2} parent=63 // pred_check
        %p1168 = pneg %p355
      $region70: #{pdqp_net_forward.2} parent=63 // pred_check_branch
        %1170 = sbr.rel (%p1168) target = $region72
      $region71: #{pdqp_net_forward.2} parent=63 // pred_region
        %s1171 = smul.u32 2, %s25
      $region72: #{pdqp_net_forward.2} parent=63 // pred_fallthru
        _
      // Predicated region
      $region73: #{pdqp_net_forward.2} parent=63 // pred_check
        %p1172 = pneg %p381
      $region74: #{pdqp_net_forward.2} parent=63 // pred_check_branch
        %1174 = sbr.rel (%p1172) target = $region76
      $region75: #{pdqp_net_forward.2} parent=63 // pred_region
        %s1175 = smul.u32 2, %s25
      $region76: #{pdqp_net_forward.2} parent=63 // pred_fallthru
        _
    $region64: #{pdqp_net_forward.2} parent=5 // pred_fallthru
      _
    %p1176 = scmp.le.s32.totalorder 2, %s20
    // Predicated region
    $region77: #{pdqp_net_forward.2} parent=5 // pred_check
      %p1177 = pneg %p1176
    $region78: #{pdqp_net_forward.2} parent=5 // pred_check_branch
      %1179 = sbr.rel (%p1177) target = $region80
    $region79: #{pdqp_net_forward.2} parent=5 // pred_region
      %s1180 = ssub.s32 %s20, 2
      // Predicated region
      $region81: #{pdqp_net_forward.2} parent=79 // pred_check
        %p1181 = pneg %p335
      $region82: #{pdqp_net_forward.2} parent=79 // pred_check_branch
        %1183 = sbr.rel (%p1181) target = $region84
      $region83: #{pdqp_net_forward.2} parent=79 // pred_region
        %s1184 = smul.u32 2, %s26
        %p1185 = scmp.lt.s32.totalorder %s1184, 3
        %s1186 = scalar_select %p1185, %s1184, 3
        %s1187 = smul.addr %s1186, 2
        %s1188 = smul.addr %s1187, 8
        %s1189 = scalar_lea.vmem %s11, %s1188
      $region84: #{pdqp_net_forward.2} parent=79 // pred_fallthru
        _
      // Predicated region
      $region85: #{pdqp_net_forward.2} parent=79 // pred_check
        %p1190 = pneg %p361
      $region86: #{pdqp_net_forward.2} parent=79 // pred_check_branch
        %1192 = sbr.rel (%p1190) target = $region88
      $region87: #{pdqp_net_forward.2} parent=79 // pred_region
        %s1193 = smul.u32 2, %s26
        %p1194 = scmp.lt.s32.totalorder %s1193, 3
        %s1195 = scalar_select %p1194, %s1193, 3
        %s1196 = smul.addr %s1195, 2
        %s1197 = smul.addr %s1196, 8
        %s1198 = scalar_lea.vmem %s12, %s1197
      $region88: #{pdqp_net_forward.2} parent=79 // pred_fallthru
        _
      // Predicated region
      $region89: #{pdqp_net_forward.2} parent=79 // pred_check
        %p1199 = pneg %p387
      $region90: #{pdqp_net_forward.2} parent=79 // pred_check_branch
        %1201 = sbr.rel (%p1199) target = $region92
      $region91: #{pdqp_net_forward.2} parent=79 // pred_region
        %s1202 = smul.u32 2, %s26
        %p1203 = scmp.lt.s32.totalorder %s1202, 3
        %s1204 = scalar_select %p1203, %s1202, 3
        %s1205 = smul.addr %s1204, 8
        %s1206 = scalar_lea.vmem %s13, %s1205
      $region92: #{pdqp_net_forward.2} parent=79 // pred_fallthru
        _
    $region80: #{pdqp_net_forward.2} parent=5 // pred_fallthru
      _
  $region6: #{pdqp_net_forward.2} parent=0 // loop_footer
    %s24 = sadd.s32 1, %s20
  $region7: #{pdqp_net_forward.2} parent=0 // loop_footer_branch
    %19 = sbr.rel target = $region3
  $region8: #{pdqp_net_forward.2} parent=0 // loop_exit
    _

// kernel: pdqp_net_forward.3
$region0: #{pdqp_net_forward.3}
  #allocation0 [shape = 'u32[]', space=smem, size = 0x4, offset = 0x4, fixed_abs, tag = 'smem constant byte address 0x4 - core index']
  #allocation1 [shape = 'u32[72,128]{1,0:T(1,128)}', space=vmem, size = 0x9000, scoped, tag = 'internal scratch']
  %s0 = inlined_call_operand.vmem [shape: f32[4,4,1], index: 0, kind: input, shape index: {}]
  %s1 = inlined_call_operand.vmem [shape: f32[4,16,32], index: 1, kind: input, shape index: {}]
  %s2 = inlined_call_operand.vmem [shape: f32[4,16,32], index: 2, kind: input, shape index: {}]
  %s3 = inlined_call_operand.vmem [shape: f32[4,8,32], index: 3, kind: input, shape index: {}]
  %s4 = inlined_call_operand.vmem [shape: f32[4,16,16], index: 4, kind: input, shape index: {}]
  %s5 = inlined_call_operand.vmem [shape: f32[4,8,16], index: 5, kind: input, shape index: {}]
  %s6 = inlined_call_operand.vmem [shape: f32[4,16,1], index: 6, kind: input, shape index: {}]
  %s7 = inlined_call_operand.vmem [shape: f32[4,16,1], index: 7, kind: input, shape index: {}]
  %s8 = inlined_call_operand.vmem [shape: f32[4,16,1], index: 8, kind: input, shape index: {}]
  %s9 = inlined_call_operand.vmem [shape: f32[4,32,32], index: 9, kind: input, shape index: {}]
  %s10 = inlined_call_operand.vmem [shape: f32[4,32,32], index: 10, kind: input, shape index: {}]
  %s11 = inlined_call_operand.vmem [shape: f32[4,16,32], index: 11, kind: output, shape index: {0}]
  %s12 = inlined_call_operand.hbm [shape: f32[4,16,32], index: 12, kind: output, shape index: {1}]
  %s13 = inlined_call_operand.vmem [shape: f32[4,8,32], index: 13, kind: output, shape index: {2}]
  %14 = xla_tuple %s11, %s12, %s13
  %s15 = sld [smem:[#allocation0]]
  $region93: #{pdqp_net_forward.3} parent=0
    _
  %s17 = ssub.s32 1, %s15
  %s18 = scalar_select 0, %s17, %s15
  $region1: #{pdqp_net_forward.3} parent=0
    #allocation2 [shape = 'u8[32768]{0}', space=vmem, size = 0x8000, scoped, tag = 'output window, operand 1']
    #allocation3 [shape = 's32[2]{0}', space=sflag, size = 0x8, scoped, tag = 'scoped memory for pdqp_net_forward.3']
    %19 = vsyncpa [#allocation3], 0
    %s20 = scalar_lea.sflag [#allocation3], 1
    %21 = vsyncpa %s20, 0
    loop: start=0, step=1, limit=4
    $region2: #{pdqp_net_forward.3} parent=1 // loop_pre_header
      _
    $region3: #{pdqp_net_forward.3} parent=1 // loop_header
      %s23 = sphi 0, %s27
      %p24 = scmp.ge.s32.totalorder %s23, 4
      %s33 = sphi 0, %s35
      %s36 = sphi 0, %s33
      %s37 = sphi 0, %s36
      %s53 = sphi 0, %s37
      %s59 = sphi 0, %s61
      %s62 = sphi 0, %s59
      %s63 = sphi 0, %s62
      %s79 = sphi 0, %s63
      %s85 = sphi 0, %s87
      %s88 = sphi 0, %s85
      %s89 = sphi 0, %s88
      %s105 = sphi 0, %s89
      %s111 = sphi 0, %s113
      %s114 = sphi 0, %s111
      %s115 = sphi 0, %s114
      %s131 = sphi 0, %s115
      %s137 = sphi 0, %s139
      %s140 = sphi 0, %s137
      %s141 = sphi 0, %s140
      %s157 = sphi 0, %s141
      %s163 = sphi 0, %s165
      %s166 = sphi 0, %s163
      %s167 = sphi 0, %s166
      %s183 = sphi 0, %s167
      %s189 = sphi 0, %s191
      %s192 = sphi 0, %s189
      %s193 = sphi 0, %s192
      %s209 = sphi 0, %s193
      %s215 = sphi 0, %s217
      %s218 = sphi 0, %s215
      %s219 = sphi 0, %s218
      %s235 = sphi 0, %s219
      %s241 = sphi 0, %s243
      %s244 = sphi 0, %s241
      %s245 = sphi 0, %s244
      %s261 = sphi 0, %s245
      %s267 = sphi 0, %s269
      %s270 = sphi 0, %s267
      %s271 = sphi 0, %s270
      %s287 = sphi 0, %s271
      %s293 = sphi 0, %s295
      %s296 = sphi 0, %s293
      %s297 = sphi 0, %s296
      %s313 = sphi 0, %s297
      %s319 = sphi 0, %s321
      %s322 = sphi 0, %s319
      %s323 = sphi 0, %s322
      %s339 = sphi 0, %s323
      %s345 = sphi 0, %s347
      %s348 = sphi 0, %s345
      %s349 = sphi 0, %s348
      %s365 = sphi 0, %s349
      %s371 = sphi 0, %s373
      %s374 = sphi 0, %s371
      %s375 = sphi 0, %s374
      %s391 = sphi 0, %s375
    $region4: #{pdqp_net_forward.3} parent=1 // loop_header_branch
      %26 = sbr.rel (%p24) target = $region8
    $region5: #{pdqp_net_forward.3} parent=1 // loop_body
      %s28 = ssub.s32 %s23, 1
      %s29 = ssub.s32 %s23, 2
      %s30 = sadd.s32 %s23, 1
      %s31 = ssub.s32 %s23, %s30
      %p32 = scmp.eq.s32.totalorder %s31, 0
      %s34 = sadd.s32 %s33, 1
      %s35 = scalar_select %p32, %s33, %s34
      %p38 = pneg %p32
      %p39 = scmp.eq.s32.totalorder %s23, 1
      %p40 = por %p38, %p39
      %p41 = scmp.ne.s32.totalorder %s33, %s36
      %p42 = scmp.eq.s32.totalorder %s23, 0
      %p43 = por %p41, %p42
      %p44 = scmp.ne.s32.totalorder %s33, %s36
      %p45 = scmp.eq.s32.totalorder %s28, 1
      %p46 = por %p44, %p45
      %p47 = scmp.ne.s32.totalorder %s36, %s37
      %p48 = scmp.eq.s32.totalorder %s28, 0
      %p49 = por %p47, %p48
      %p50 = scmp.ne.s32.totalorder %s36, %s37
      %p51 = scmp.eq.s32.totalorder %s29, 1
      %p52 = por %p50, %p51
      %p54 = scmp.ne.s32.totalorder %s37, %s53
      %p55 = scmp.eq.s32.totalorder %s29, 0
      %p56 = por %p54, %p55
      %s57 = ssub.s32 %s23, %s30
      %p58 = scmp.eq.s32.totalorder %s57, 0
      %s60 = sadd.s32 %s59, 1
      %s61 = scalar_select %p58, %s59, %s60
      %p64 = pneg %p58
      %p65 = scmp.eq.s32.totalorder %s23, 1
      %p66 = por %p64, %p65
      %p67 = scmp.ne.s32.totalorder %s59, %s62
      %p68 = scmp.eq.s32.totalorder %s23, 0
      %p69 = por %p67, %p68
      %p70 = scmp.ne.s32.totalorder %s59, %s62
      %p71 = scmp.eq.s32.totalorder %s28, 1
      %p72 = por %p70, %p71
      %p73 = scmp.ne.s32.totalorder %s62, %s63
      %p74 = scmp.eq.s32.totalorder %s28, 0
      %p75 = por %p73, %p74
      %p76 = scmp.ne.s32.totalorder %s62, %s63
      %p77 = scmp.eq.s32.totalorder %s29, 1
      %p78 = por %p76, %p77
      %p80 = scmp.ne.s32.totalorder %s63, %s79
      %p81 = scmp.eq.s32.totalorder %s29, 0
      %p82 = por %p80, %p81
      %s83 = ssub.s32 %s23, %s30
      %p84 = scmp.eq.s32.totalorder %s83, 0
      %s86 = sadd.s32 %s85, 1
      %s87 = scalar_select %p84, %s85, %s86
      %p90 = pneg %p84
      %p91 = scmp.eq.s32.totalorder %s23, 1
      %p92 = por %p90, %p91
      %p93 = scmp.ne.s32.totalorder %s85, %s88
      %p94 = scmp.eq.s32.totalorder %s23, 0
      %p95 = por %p93, %p94
      %p96 = scmp.ne.s32.totalorder %s85, %s88
      %p97 = scmp.eq.s32.totalorder %s28, 1
      %p98 = por %p96, %p97
      %p99 = scmp.ne.s32.totalorder %s88, %s89
      %p100 = scmp.eq.s32.totalorder %s28, 0
      %p101 = por %p99, %p100
      %p102 = scmp.ne.s32.totalorder %s88, %s89
      %p103 = scmp.eq.s32.totalorder %s29, 1
      %p104 = por %p102, %p103
      %p106 = scmp.ne.s32.totalorder %s89, %s105
      %p107 = scmp.eq.s32.totalorder %s29, 0
      %p108 = por %p106, %p107
      %s109 = ssub.s32 %s23, %s30
      %p110 = scmp.eq.s32.totalorder %s109, 0
      %s112 = sadd.s32 %s111, 1
      %s113 = scalar_select %p110, %s111, %s112
      %p116 = pneg %p110
      %p117 = scmp.eq.s32.totalorder %s23, 1
      %p118 = por %p116, %p117
      %p119 = scmp.ne.s32.totalorder %s111, %s114
      %p120 = scmp.eq.s32.totalorder %s23, 0
      %p121 = por %p119, %p120
      %p122 = scmp.ne.s32.totalorder %s111, %s114
      %p123 = scmp.eq.s32.totalorder %s28, 1
      %p124 = por %p122, %p123
      %p125 = scmp.ne.s32.totalorder %s114, %s115
      %p126 = scmp.eq.s32.totalorder %s28, 0
      %p127 = por %p125, %p126
      %p128 = scmp.ne.s32.totalorder %s114, %s115
      %p129 = scmp.eq.s32.totalorder %s29, 1
      %p130 = por %p128, %p129
      %p132 = scmp.ne.s32.totalorder %s115, %s131
      %p133 = scmp.eq.s32.totalorder %s29, 0
      %p134 = por %p132, %p133
      %s135 = ssub.s32 %s23, %s30
      %p136 = scmp.eq.s32.totalorder %s135, 0
      %s138 = sadd.s32 %s137, 1
      %s139 = scalar_select %p136, %s137, %s138
      %p142 = pneg %p136
      %p143 = scmp.eq.s32.totalorder %s23, 1
      %p144 = por %p142, %p143
      %p145 = scmp.ne.s32.totalorder %s137, %s140
      %p146 = scmp.eq.s32.totalorder %s23, 0
      %p147 = por %p145, %p146
      %p148 = scmp.ne.s32.totalorder %s137, %s140
      %p149 = scmp.eq.s32.totalorder %s28, 1
      %p150 = por %p148, %p149
      %p151 = scmp.ne.s32.totalorder %s140, %s141
      %p152 = scmp.eq.s32.totalorder %s28, 0
      %p153 = por %p151, %p152
      %p154 = scmp.ne.s32.totalorder %s140, %s141
      %p155 = scmp.eq.s32.totalorder %s29, 1
      %p156 = por %p154, %p155
      %p158 = scmp.ne.s32.totalorder %s141, %s157
      %p159 = scmp.eq.s32.totalorder %s29, 0
      %p160 = por %p158, %p159
      %s161 = ssub.s32 %s23, %s30
      %p162 = scmp.eq.s32.totalorder %s161, 0
      %s164 = sadd.s32 %s163, 1
      %s165 = scalar_select %p162, %s163, %s164
      %p168 = pneg %p162
      %p169 = scmp.eq.s32.totalorder %s23, 1
      %p170 = por %p168, %p169
      %p171 = scmp.ne.s32.totalorder %s163, %s166
      %p172 = scmp.eq.s32.totalorder %s23, 0
      %p173 = por %p171, %p172
      %p174 = scmp.ne.s32.totalorder %s163, %s166
      %p175 = scmp.eq.s32.totalorder %s28, 1
      %p176 = por %p174, %p175
      %p177 = scmp.ne.s32.totalorder %s166, %s167
      %p178 = scmp.eq.s32.totalorder %s28, 0
      %p179 = por %p177, %p178
      %p180 = scmp.ne.s32.totalorder %s166, %s167
      %p181 = scmp.eq.s32.totalorder %s29, 1
      %p182 = por %p180, %p181
      %p184 = scmp.ne.s32.totalorder %s167, %s183
      %p185 = scmp.eq.s32.totalorder %s29, 0
      %p186 = por %p184, %p185
      %s187 = ssub.s32 %s23, %s30
      %p188 = scmp.eq.s32.totalorder %s187, 0
      %s190 = sadd.s32 %s189, 1
      %s191 = scalar_select %p188, %s189, %s190
      %p194 = pneg %p188
      %p195 = scmp.eq.s32.totalorder %s23, 1
      %p196 = por %p194, %p195
      %p197 = scmp.ne.s32.totalorder %s189, %s192
      %p198 = scmp.eq.s32.totalorder %s23, 0
      %p199 = por %p197, %p198
      %p200 = scmp.ne.s32.totalorder %s189, %s192
      %p201 = scmp.eq.s32.totalorder %s28, 1
      %p202 = por %p200, %p201
      %p203 = scmp.ne.s32.totalorder %s192, %s193
      %p204 = scmp.eq.s32.totalorder %s28, 0
      %p205 = por %p203, %p204
      %p206 = scmp.ne.s32.totalorder %s192, %s193
      %p207 = scmp.eq.s32.totalorder %s29, 1
      %p208 = por %p206, %p207
      %p210 = scmp.ne.s32.totalorder %s193, %s209
      %p211 = scmp.eq.s32.totalorder %s29, 0
      %p212 = por %p210, %p211
      %s213 = ssub.s32 %s23, %s30
      %p214 = scmp.eq.s32.totalorder %s213, 0
      %s216 = sadd.s32 %s215, 1
      %s217 = scalar_select %p214, %s215, %s216
      %p220 = pneg %p214
      %p221 = scmp.eq.s32.totalorder %s23, 1
      %p222 = por %p220, %p221
      %p223 = scmp.ne.s32.totalorder %s215, %s218
      %p224 = scmp.eq.s32.totalorder %s23, 0
      %p225 = por %p223, %p224
      %p226 = scmp.ne.s32.totalorder %s215, %s218
      %p227 = scmp.eq.s32.totalorder %s28, 1
      %p228 = por %p226, %p227
      %p229 = scmp.ne.s32.totalorder %s218, %s219
      %p230 = scmp.eq.s32.totalorder %s28, 0
      %p231 = por %p229, %p230
      %p232 = scmp.ne.s32.totalorder %s218, %s219
      %p233 = scmp.eq.s32.totalorder %s29, 1
      %p234 = por %p232, %p233
      %p236 = scmp.ne.s32.totalorder %s219, %s235
      %p237 = scmp.eq.s32.totalorder %s29, 0
      %p238 = por %p236, %p237
      %s239 = ssub.s32 %s23, %s30
      %p240 = scmp.eq.s32.totalorder %s239, 0
      %s242 = sadd.s32 %s241, 1
      %s243 = scalar_select %p240, %s241, %s242
      %p246 = pneg %p240
      %p247 = scmp.eq.s32.totalorder %s23, 1
      %p248 = por %p246, %p247
      %p249 = scmp.ne.s32.totalorder %s241, %s244
      %p250 = scmp.eq.s32.totalorder %s23, 0
      %p251 = por %p249, %p250
      %p252 = scmp.ne.s32.totalorder %s241, %s244
      %p253 = scmp.eq.s32.totalorder %s28, 1
      %p254 = por %p252, %p253
      %p255 = scmp.ne.s32.totalorder %s244, %s245
      %p256 = scmp.eq.s32.totalorder %s28, 0
      %p257 = por %p255, %p256
      %p258 = scmp.ne.s32.totalorder %s244, %s245
      %p259 = scmp.eq.s32.totalorder %s29, 1
      %p260 = por %p258, %p259
      %p262 = scmp.ne.s32.totalorder %s245, %s261
      %p263 = scmp.eq.s32.totalorder %s29, 0
      %p264 = por %p262, %p263
      %s265 = ssub.s32 %s23, %s30
      %p266 = scmp.eq.s32.totalorder %s265, 0
      %s268 = sadd.s32 %s267, 1
      %s269 = scalar_select %p266, %s267, %s268
      %p272 = pneg %p266
      %p273 = scmp.eq.s32.totalorder %s23, 1
      %p274 = por %p272, %p273
      %p275 = scmp.ne.s32.totalorder %s267, %s270
      %p276 = scmp.eq.s32.totalorder %s23, 0
      %p277 = por %p275, %p276
      %p278 = scmp.ne.s32.totalorder %s267, %s270
      %p279 = scmp.eq.s32.totalorder %s28, 1
      %p280 = por %p278, %p279
      %p281 = scmp.ne.s32.totalorder %s270, %s271
      %p282 = scmp.eq.s32.totalorder %s28, 0
      %p283 = por %p281, %p282
      %p284 = scmp.ne.s32.totalorder %s270, %s271
      %p285 = scmp.eq.s32.totalorder %s29, 1
      %p286 = por %p284, %p285
      %p288 = scmp.ne.s32.totalorder %s271, %s287
      %p289 = scmp.eq.s32.totalorder %s29, 0
      %p290 = por %p288, %p289
      %s291 = ssub.s32 %s23, %s30
      %p292 = scmp.eq.s32.totalorder %s291, 0
      %s294 = sadd.s32 %s293, 1
      %s295 = scalar_select %p292, %s293, %s294
      %p298 = pneg %p292
      %p299 = scmp.eq.s32.totalorder %s23, 1
      %p300 = por %p298, %p299
      %p301 = scmp.ne.s32.totalorder %s293, %s296
      %p302 = scmp.eq.s32.totalorder %s23, 0
      %p303 = por %p301, %p302
      %p304 = scmp.ne.s32.totalorder %s293, %s296
      %p305 = scmp.eq.s32.totalorder %s28, 1
      %p306 = por %p304, %p305
      %p307 = scmp.ne.s32.totalorder %s296, %s297
      %p308 = scmp.eq.s32.totalorder %s28, 0
      %p309 = por %p307, %p308
      %p310 = scmp.ne.s32.totalorder %s296, %s297
      %p311 = scmp.eq.s32.totalorder %s29, 1
      %p312 = por %p310, %p311
      %p314 = scmp.ne.s32.totalorder %s297, %s313
      %p315 = scmp.eq.s32.totalorder %s29, 0
      %p316 = por %p314, %p315
      %s317 = ssub.s32 %s23, %s30
      %p318 = scmp.eq.s32.totalorder %s317, 0
      %s320 = sadd.s32 %s319, 1
      %s321 = scalar_select %p318, %s319, %s320
      %p324 = pneg %p318
      %p325 = scmp.eq.s32.totalorder %s23, 1
      %p326 = por %p324, %p325
      %p327 = scmp.ne.s32.totalorder %s319, %s322
      %p328 = scmp.eq.s32.totalorder %s23, 0
      %p329 = por %p327, %p328
      %p330 = scmp.ne.s32.totalorder %s319, %s322
      %p331 = scmp.eq.s32.totalorder %s28, 1
      %p332 = por %p330, %p331
      %p333 = scmp.ne.s32.totalorder %s322, %s323
      %p334 = scmp.eq.s32.totalorder %s28, 0
      %p335 = por %p333, %p334
      %p336 = scmp.ne.s32.totalorder %s322, %s323
      %p337 = scmp.eq.s32.totalorder %s29, 1
      %p338 = por %p336, %p337
      %p340 = scmp.ne.s32.totalorder %s323, %s339
      %p341 = scmp.eq.s32.totalorder %s29, 0
      %p342 = por %p340, %p341
      %s343 = ssub.s32 %s23, %s30
      %p344 = scmp.eq.s32.totalorder %s343, 0
      %s346 = sadd.s32 %s345, 1
      %s347 = scalar_select %p344, %s345, %s346
      %p350 = pneg %p344
      %p351 = scmp.eq.s32.totalorder %s23, 1
      %p352 = por %p350, %p351
      %p353 = scmp.ne.s32.totalorder %s345, %s348
      %p354 = scmp.eq.s32.totalorder %s23, 0
      %p355 = por %p353, %p354
      %p356 = scmp.ne.s32.totalorder %s345, %s348
      %p357 = scmp.eq.s32.totalorder %s28, 1
      %p358 = por %p356, %p357
      %p359 = scmp.ne.s32.totalorder %s348, %s349
      %p360 = scmp.eq.s32.totalorder %s28, 0
      %p361 = por %p359, %p360
      %p362 = scmp.ne.s32.totalorder %s348, %s349
      %p363 = scmp.eq.s32.totalorder %s29, 1
      %p364 = por %p362, %p363
      %p366 = scmp.ne.s32.totalorder %s349, %s365
      %p367 = scmp.eq.s32.totalorder %s29, 0
      %p368 = por %p366, %p367
      %s369 = ssub.s32 %s23, %s30
      %p370 = scmp.eq.s32.totalorder %s369, 0
      %s372 = sadd.s32 %s371, 1
      %s373 = scalar_select %p370, %s371, %s372
      %p376 = pneg %p370
      %p377 = scmp.eq.s32.totalorder %s23, 1
      %p378 = por %p376, %p377
      %p379 = scmp.ne.s32.totalorder %s371, %s374
      %p380 = scmp.eq.s32.totalorder %s23, 0
      %p381 = por %p379, %p380
      %p382 = scmp.ne.s32.totalorder %s371, %s374
      %p383 = scmp.eq.s32.totalorder %s28, 1
      %p384 = por %p382, %p383
      %p385 = scmp.ne.s32.totalorder %s374, %s375
      %p386 = scmp.eq.s32.totalorder %s28, 0
      %p387 = por %p385, %p386
      %p388 = scmp.ne.s32.totalorder %s374, %s375
      %p389 = scmp.eq.s32.totalorder %s29, 1
      %p390 = por %p388, %p389
      %p392 = scmp.ne.s32.totalorder %s375, %s391
      %p393 = scmp.eq.s32.totalorder %s29, 0
      %p394 = por %p392, %p393
      %p395 = scmp.le.s32.totalorder 1, %s23
      %p396 = scmp.lt.s32.totalorder %s23, 3
      %p397 = pnand %p395, %p396
      %p398 = pneg %p397
      // Predicated region
      $region9: #{pdqp_net_forward.3} parent=5 // pred_check
        _
      $region10: #{pdqp_net_forward.3} parent=5 // pred_check_branch
        %400 = sbr.rel (%p397) target = $region12
      $region11: #{pdqp_net_forward.3} parent=5 // pred_region
        %s401 = ssub.s32 %s23, 1
      $region12: #{pdqp_net_forward.3} parent=5 // pred_fallthru
        _
      %p402 = scmp.lt.s32.totalorder %s23, 2
      // Predicated region
      $region13: #{pdqp_net_forward.3} parent=5 // pred_check
        %p403 = pneg %p402
      $region14: #{pdqp_net_forward.3} parent=5 // pred_check_branch
        %405 = sbr.rel (%p403) target = $region16
      $region15: #{pdqp_net_forward.3} parent=5 // pred_region
        // Predicated region
        $region17: #{pdqp_net_forward.3} parent=15 // pred_check
          %p406 = pneg %p43
        $region18: #{pdqp_net_forward.3} parent=15 // pred_check_branch
          %408 = sbr.rel (%p406) target = $region20
        $region19: #{pdqp_net_forward.3} parent=15 // pred_region
          %s409 = smul.u32 2, %s23
          %p410 = scmp.lt.s32.totalorder %s409, 3
          %s411 = scalar_select %p410, %s409, 3
          %s412 = smul.addr %s411, 4
          %s413 = scalar_lea.vmem %s0, %s412
          %s414 = smul.u32 2, %s23
        $region20: #{pdqp_net_forward.3} parent=15 // pred_fallthru
          _
        // Predicated region
        $region21: #{pdqp_net_forward.3} parent=15 // pred_check
          %p415 = pneg %p69
        $region22: #{pdqp_net_forward.3} parent=15 // pred_check_branch
          %417 = sbr.rel (%p415) target = $region24
        $region23: #{pdqp_net_forward.3} parent=15 // pred_region
          %s418 = smul.u32 2, %s23
          %p419 = scmp.lt.s32.totalorder %s418, 3
          %s420 = scalar_select %p419, %s418, 3
          %s421 = smul.addr %s420, 2
          %s422 = smul.addr %s421, 8
          %s423 = scalar_lea.vmem %s1, %s422
          %s424 = smul.u32 2, %s23
        $region24: #{pdqp_net_forward.3} parent=15 // pred_fallthru
          _
        // Predicated region
        $region25: #{pdqp_net_forward.3} parent=15 // pred_check
          %p425 = pneg %p95
        $region26: #{pdqp_net_forward.3} parent=15 // pred_check_branch
          %427 = sbr.rel (%p425) target = $region28
        $region27: #{pdqp_net_forward.3} parent=15 // pred_region
          %s428 = smul.u32 2, %s23
          %p429 = scmp.lt.s32.totalorder %s428, 3
          %s430 = scalar_select %p429, %s428, 3
          %s431 = smul.addr %s430, 2
          %s432 = smul.addr %s431, 8
          %s433 = scalar_lea.vmem %s2, %s432
          %s434 = smul.u32 2, %s23
        $region28: #{pdqp_net_forward.3} parent=15 // pred_fallthru
          _
        // Predicated region
        $region29: #{pdqp_net_forward.3} parent=15 // pred_check
          %p435 = pneg %p121
        $region30: #{pdqp_net_forward.3} parent=15 // pred_check_branch
          %437 = sbr.rel (%p435) target = $region32
        $region31: #{pdqp_net_forward.3} parent=15 // pred_region
          %s438 = smul.u32 2, %s23
          %p439 = scmp.lt.s32.totalorder %s438, 3
          %s440 = scalar_select %p439, %s438, 3
          %s441 = smul.addr %s440, 8
          %s442 = scalar_lea.vmem %s3, %s441
          %s443 = smul.u32 2, %s23
        $region32: #{pdqp_net_forward.3} parent=15 // pred_fallthru
          _
        // Predicated region
        $region33: #{pdqp_net_forward.3} parent=15 // pred_check
          %p444 = pneg %p147
        $region34: #{pdqp_net_forward.3} parent=15 // pred_check_branch
          %446 = sbr.rel (%p444) target = $region36
        $region35: #{pdqp_net_forward.3} parent=15 // pred_region
          %s447 = smul.u32 2, %s23
          %p448 = scmp.lt.s32.totalorder %s447, 3
          %s449 = scalar_select %p448, %s447, 3
          %s450 = smul.addr %s449, 2
          %s451 = smul.addr %s450, 8
          %s452 = scalar_lea.vmem %s4, %s451
          %s453 = smul.u32 2, %s23
        $region36: #{pdqp_net_forward.3} parent=15 // pred_fallthru
          _
        // Predicated region
        $region37: #{pdqp_net_forward.3} parent=15 // pred_check
          %p454 = pneg %p173
        $region38: #{pdqp_net_forward.3} parent=15 // pred_check_branch
          %456 = sbr.rel (%p454) target = $region40
        $region39: #{pdqp_net_forward.3} parent=15 // pred_region
          %s457 = smul.u32 2, %s23
          %p458 = scmp.lt.s32.totalorder %s457, 3
          %s459 = scalar_select %p458, %s457, 3
          %s460 = smul.addr %s459, 8
          %s461 = scalar_lea.vmem %s5, %s460
          %s462 = smul.u32 2, %s23
        $region40: #{pdqp_net_forward.3} parent=15 // pred_fallthru
          _
        // Predicated region
        $region41: #{pdqp_net_forward.3} parent=15 // pred_check
          %p463 = pneg %p199
        $region42: #{pdqp_net_forward.3} parent=15 // pred_check_branch
          %465 = sbr.rel (%p463) target = $region44
        $region43: #{pdqp_net_forward.3} parent=15 // pred_region
          %s466 = smul.u32 2, %s23
          %p467 = scmp.lt.s32.totalorder %s466, 3
          %s468 = scalar_select %p467, %s466, 3
          %s469 = smul.addr %s468, 2
          %s470 = smul.addr %s469, 8
          %s471 = scalar_lea.vmem %s6, %s470
          %s472 = smul.u32 2, %s23
        $region44: #{pdqp_net_forward.3} parent=15 // pred_fallthru
          _
        // Predicated region
        $region45: #{pdqp_net_forward.3} parent=15 // pred_check
          %p473 = pneg %p225
        $region46: #{pdqp_net_forward.3} parent=15 // pred_check_branch
          %475 = sbr.rel (%p473) target = $region48
        $region47: #{pdqp_net_forward.3} parent=15 // pred_region
          %s476 = smul.u32 2, %s23
          %p477 = scmp.lt.s32.totalorder %s476, 3
          %s478 = scalar_select %p477, %s476, 3
          %s479 = smul.addr %s478, 2
          %s480 = smul.addr %s479, 8
          %s481 = scalar_lea.vmem %s7, %s480
          %s482 = smul.u32 2, %s23
        $region48: #{pdqp_net_forward.3} parent=15 // pred_fallthru
          _
        // Predicated region
        $region49: #{pdqp_net_forward.3} parent=15 // pred_check
          %p483 = pneg %p251
        $region50: #{pdqp_net_forward.3} parent=15 // pred_check_branch
          %485 = sbr.rel (%p483) target = $region52
        $region51: #{pdqp_net_forward.3} parent=15 // pred_region
          %s486 = smul.u32 2, %s23
          %p487 = scmp.lt.s32.totalorder %s486, 3
          %s488 = scalar_select %p487, %s486, 3
          %s489 = smul.addr %s488, 2
          %s490 = smul.addr %s489, 8
          %s491 = scalar_lea.vmem %s8, %s490
          %s492 = smul.u32 2, %s23
        $region52: #{pdqp_net_forward.3} parent=15 // pred_fallthru
          _
        // Predicated region
        $region53: #{pdqp_net_forward.3} parent=15 // pred_check
          %p493 = pneg %p277
        $region54: #{pdqp_net_forward.3} parent=15 // pred_check_branch
          %495 = sbr.rel (%p493) target = $region56
        $region55: #{pdqp_net_forward.3} parent=15 // pred_region
          %s496 = smul.u32 2, %s23
          %p497 = scmp.lt.s32.totalorder %s496, 3
          %s498 = scalar_select %p497, %s496, 3
          %s499 = smul.addr %s498, 4
          %s500 = smul.addr %s499, 8
          %s501 = scalar_lea.vmem %s9, %s500
          %s502 = smul.u32 2, %s23
        $region56: #{pdqp_net_forward.3} parent=15 // pred_fallthru
          _
        // Predicated region
        $region57: #{pdqp_net_forward.3} parent=15 // pred_check
          %p503 = pneg %p303
        $region58: #{pdqp_net_forward.3} parent=15 // pred_check_branch
          %505 = sbr.rel (%p503) target = $region60
        $region59: #{pdqp_net_forward.3} parent=15 // pred_region
          %s506 = smul.u32 2, %s23
          %p507 = scmp.lt.s32.totalorder %s506, 3
          %s508 = scalar_select %p507, %s506, 3
          %s509 = smul.addr %s508, 4
          %s510 = smul.addr %s509, 8
          %s511 = scalar_lea.vmem %s10, %s510
          %s512 = smul.u32 2, %s23
        $region60: #{pdqp_net_forward.3} parent=15 // pred_fallthru
          _
      $region16: #{pdqp_net_forward.3} parent=5 // pred_fallthru
        _
      %p513 = scmp.le.s32.totalorder 1, %s23
      %p514 = scmp.lt.s32.totalorder %s23, 3
      %p515 = pnand %p513, %p514
      %p516 = pneg %p515
      // Predicated region
      $region61: #{pdqp_net_forward.3} parent=5 // pred_check
        _
      $region62: #{pdqp_net_forward.3} parent=5 // pred_check_branch
        %518 = sbr.rel (%p515) target = $region64
      $region63: #{pdqp_net_forward.3} parent=5 // pred_region
        %s519 = ssub.s32 %s23, 1
        %s520 = smul.u32 2, %s28
        %p521 = scmp.lt.s32.totalorder %s520, 3
        %s522 = scalar_select %p521, %s520, 3
        %s523 = smul.addr %s522, 4
        %s524 = scalar_lea.vmem %s0, %s523
        %p525 = pneg %p49
        %p526 = pneg %p46
        %s527 = smul.u32 2, %s28
        %p528 = scmp.lt.s32.totalorder %s527, 3
        %s529 = scalar_select %p528, %s527, 3
        %s530 = smul.addr %s529, 2
        %s531 = smul.addr %s530, 8
        %s532 = scalar_lea.vmem %s1, %s531
        %p533 = pneg %p75
        %p534 = pneg %p72
        %s535 = smul.u32 2, %s28
        %p536 = scmp.lt.s32.totalorder %s535, 3
        %s537 = scalar_select %p536, %s535, 3
        %s538 = smul.addr %s537, 2
        %s539 = smul.addr %s538, 8
        %s540 = scalar_lea.vmem %s2, %s539
        %p541 = pneg %p101
        %p542 = pneg %p98
        %s543 = smul.u32 2, %s28
        %p544 = scmp.lt.s32.totalorder %s543, 3
        %s545 = scalar_select %p544, %s543, 3
        %s546 = smul.addr %s545, 8
        %s547 = scalar_lea.vmem %s3, %s546
        %p548 = pneg %p127
        %p549 = pneg %p124
        %s550 = smul.u32 2, %s28
        %p551 = scmp.lt.s32.totalorder %s550, 3
        %s552 = scalar_select %p551, %s550, 3
        %s553 = smul.addr %s552, 2
        %s554 = smul.addr %s553, 8
        %s555 = scalar_lea.vmem %s4, %s554
        %p556 = pneg %p153
        %p557 = pneg %p150
        %s558 = smul.u32 2, %s28
        %p559 = scmp.lt.s32.totalorder %s558, 3
        %s560 = scalar_select %p559, %s558, 3
        %s561 = smul.addr %s560, 8
        %s562 = scalar_lea.vmem %s5, %s561
        %p563 = pneg %p179
        %p564 = pneg %p176
        %s565 = smul.u32 2, %s28
        %p566 = scmp.lt.s32.totalorder %s565, 3
        %s567 = scalar_select %p566, %s565, 3
        %s568 = smul.addr %s567, 2
        %s569 = smul.addr %s568, 8
        %s570 = scalar_lea.vmem %s6, %s569
        %p571 = pneg %p205
        %p572 = pneg %p202
        %s573 = smul.u32 2, %s28
        %p574 = scmp.lt.s32.totalorder %s573, 3
        %s575 = scalar_select %p574, %s573, 3
        %s576 = smul.addr %s575, 2
        %s577 = smul.addr %s576, 8
        %s578 = scalar_lea.vmem %s7, %s577
        %p579 = pneg %p231
        %p580 = pneg %p228
        %s581 = smul.u32 2, %s28
        %p582 = scmp.lt.s32.totalorder %s581, 3
        %s583 = scalar_select %p582, %s581, 3
        %s584 = smul.addr %s583, 2
        %s585 = smul.addr %s584, 8
        %s586 = scalar_lea.vmem %s8, %s585
        %p587 = pneg %p257
        %p588 = pneg %p254
        %s589 = smul.u32 2, %s28
        %p590 = scmp.lt.s32.totalorder %s589, 3
        %s591 = scalar_select %p590, %s589, 3
        %s592 = smul.addr %s591, 4
        %s593 = smul.addr %s592, 8
        %s594 = scalar_lea.vmem %s9, %s593
        %p595 = pneg %p283
        %p596 = pneg %p280
        %s597 = smul.u32 2, %s28
        %p598 = scmp.lt.s32.totalorder %s597, 3
        %s599 = scalar_select %p598, %s597, 3
        %s600 = smul.addr %s599, 4
        %s601 = smul.addr %s600, 8
        %s602 = scalar_lea.vmem %s10, %s601
        %p603 = pneg %p309
        %p604 = pneg %p306
        %p605 = pneg %p335
        %p606 = pneg %p332
        %s607 = smul.u32 2, %s28
        %p608 = scmp.lt.s32.totalorder %s607, 3
        %s609 = scalar_select %p608, %s607, 3
        %s610 = smul.addr %s609, 2
        %s611 = smul.addr %s610, 8
        %s612 = scalar_lea.vmem %s11, %s611
        %p613 = pneg %p361
        %p614 = pneg %p358
        %s615 = sand.u32 %s348, 1
        %s616 = scalar_lea.sflag [#allocation3], %s615
        %s617 = sand.u32 %s348, 1
        %s618 = smul.addr %s617, 32
        %s619 = scalar_lea.vmem [#allocation2], %s618
        %p620 = pneg %p387
        %p621 = pneg %p384
        %s622 = smul.u32 2, %s28
        %p623 = scmp.lt.s32.totalorder %s622, 3
        %s624 = scalar_select %p623, %s622, 3
        %s625 = smul.addr %s624, 8
        %s626 = scalar_lea.vmem %s13, %s625
        %s627 = smul.u32 2, %s28
        %p628 = scmp.lt.s32.totalorder %s627, 3
        %s629 = scalar_select %p628, %s627, 3
        %s630 = smul.addr %s629, 4
        %s631 = scalar_lea.vmem %s0, %s630
        %s632 = smul.u32 2, %s28
        %s633 = smul.u32 2, %s28
        %p634 = scmp.lt.s32.totalorder %s633, 3
        %s635 = scalar_select %p634, %s633, 3
        %s636 = smul.addr %s635, 2
        %s637 = smul.addr %s636, 8
        %s638 = scalar_lea.vmem %s1, %s637
        %s639 = smul.u32 2, %s28
        %s640 = smul.u32 2, %s28
        %p641 = scmp.lt.s32.totalorder %s640, 3
        %s642 = scalar_select %p641, %s640, 3
        %s643 = smul.addr %s642, 2
        %s644 = smul.addr %s643, 8
        %s645 = scalar_lea.vmem %s2, %s644
        %s646 = smul.u32 2, %s28
        %s647 = smul.u32 2, %s28
        %p648 = scmp.lt.s32.totalorder %s647, 3
        %s649 = scalar_select %p648, %s647, 3
        %s650 = smul.addr %s649, 8
        %s651 = scalar_lea.vmem %s3, %s650
        %s652 = smul.u32 2, %s28
        %s653 = smul.u32 2, %s28
        %p654 = scmp.lt.s32.totalorder %s653, 3
        %s655 = scalar_select %p654, %s653, 3
        %s656 = smul.addr %s655, 2
        %s657 = smul.addr %s656, 8
        %s658 = scalar_lea.vmem %s4, %s657
        %s659 = smul.u32 2, %s28
        %s660 = smul.u32 2, %s28
        %p661 = scmp.lt.s32.totalorder %s660, 3
        %s662 = scalar_select %p661, %s660, 3
        %s663 = smul.addr %s662, 8
        %s664 = scalar_lea.vmem %s5, %s663
        %s665 = smul.u32 2, %s28
        %s666 = smul.u32 2, %s28
        %p667 = scmp.lt.s32.totalorder %s666, 3
        %s668 = scalar_select %p667, %s666, 3
        %s669 = smul.addr %s668, 2
        %s670 = smul.addr %s669, 8
        %s671 = scalar_lea.vmem %s6, %s670
        %s672 = smul.u32 2, %s28
        %s673 = smul.u32 2, %s28
        %p674 = scmp.lt.s32.totalorder %s673, 3
        %s675 = scalar_select %p674, %s673, 3
        %s676 = smul.addr %s675, 2
        %s677 = smul.addr %s676, 8
        %s678 = scalar_lea.vmem %s7, %s677
        %s679 = smul.u32 2, %s28
        %s680 = smul.u32 2, %s28
        %p681 = scmp.lt.s32.totalorder %s680, 3
        %s682 = scalar_select %p681, %s680, 3
        %s683 = smul.addr %s682, 2
        %s684 = smul.addr %s683, 8
        %s685 = scalar_lea.vmem %s8, %s684
        %s686 = smul.u32 2, %s28
        %s687 = smul.u32 2, %s28
        %p688 = scmp.lt.s32.totalorder %s687, 3
        %s689 = scalar_select %p688, %s687, 3
        %s690 = smul.addr %s689, 4
        %s691 = smul.addr %s690, 8
        %s692 = scalar_lea.vmem %s9, %s691
        %s693 = smul.u32 2, %s28
        %s694 = smul.u32 2, %s28
        %p695 = scmp.lt.s32.totalorder %s694, 3
        %s696 = scalar_select %p695, %s694, 3
        %s697 = smul.addr %s696, 4
        %s698 = smul.addr %s697, 8
        %s699 = scalar_lea.vmem %s10, %s698
        %s700 = smul.u32 2, %s28
        %s701 = smul.u32 2, %s28
        %p702 = scmp.lt.s32.totalorder %s701, 3
        %s703 = scalar_select %p702, %s701, 3
        %s704 = smul.addr %s703, 2
        %s705 = smul.addr %s704, 8
        %s706 = scalar_lea.vmem %s11, %s705
        %s707 = smul.u32 2, %s28
        %s708 = smul.u32 2, %s28
        %s709 = smul.u32 2, %s28
        %p710 = scmp.lt.s32.totalorder %s709, 3
        %s711 = scalar_select %p710, %s709, 3
        %s712 = smul.addr %s711, 8
        %s713 = scalar_lea.vmem %s13, %s712
        %s714 = smul.u32 2, %s28
        %v715 = vld [vmem:[%s631] sm:$0xf]
        %v716 = vld [vmem:[%s631 + $0x4] sm:$0xf]
        %v717 = vld [vmem:[%s638] sm:$0xff]
        %v718 = vld [vmem:[%s638 + $0x8] sm:$0xff]
        %v719 = vld [vmem:[%s638 + $0x10] sm:$0xff]
        %v720 = vld [vmem:[%s638 + $0x18] sm:$0xff]
        %v721 = vld [vmem:[%s645] sm:$0xff]
        %v722 = vld [vmem:[%s645 + $0x8] sm:$0xff]
        %v723 = vld [vmem:[%s645 + $0x10] sm:$0xff]
        %v724 = vld [vmem:[%s645 + $0x18] sm:$0xff]
        %v725 = vsub.f32 1.0, %v715
        %v726 = vsub.f32 1.0, %v716
        %v729 = vrot.slane %v725, 1
        %v730 = vrot.slane %v726, 1
        %s731 = vtos %v729
        %v732 = vstv %s731
        %s734 = vtos %v730
        %v735 = vstv %s734
        %v737 = vmul.f32 %v732, %v721
        %v738 = vmul.f32 %v732, %v722
        %v739 = vmul.f32 %v735, %v723
        %v740 = vmul.f32 %v735, %v724
        %v743 = vrot.slane %v715, 1
        %v744 = vrot.slane %v716, 1
        %s745 = vtos %v743
        %v746 = vstv %s745
        %s748 = vtos %v744
        %v749 = vstv %s748
        %v751 = vmul.f32 %v746, %v717
        %v752 = vmul.f32 %v746, %v718
        %v753 = vmul.f32 %v749, %v719
        %v754 = vmul.f32 %v749, %v720
        %v755 = vadd.f32 %v737, %v751
        %v756 = vadd.f32 %v738, %v752
        %v757 = vadd.f32 %v739, %v753
        %v758 = vadd.f32 %v740, %v754
        %v759 = vld [vmem:[%s658] sm:$0xff]
        %v760 = vld [vmem:[%s658 + $0x8] sm:$0xff]
        %v761 = vld [vmem:[%s658 + $0x10] sm:$0xff]
        %v762 = vld [vmem:[%s658 + $0x18] sm:$0xff]
        %vm763 = vcmask 130048
        %v765 = vsel %vm763, %v759, 0
        %v768 = vsel %vm763, %v760, 0
        %770 = vmatpush.msra.mxu0 0.0
        %771 = vmatpush.msra.mxu0 0.0
        %772 = vmatpush.msra.mxu0 0.0
        %773 = vmatpush.msra.mxu0 0.0
        %774 = vmatpush.msra.mxu0 0.0
        %775 = vmatpush.msra.mxu0 0.0
        %776 = vmatpush.msra.mxu0 0.0
        %777 = vmatpush.msra.mxu0 0.0
        %778 = vmatpush.msra.mxu0 0.0
        %779 = vmatpush.msra.mxu0 0.0
        %780 = vmatpush.msra.mxu0 0.0
        %781 = vmatpush.msra.mxu0 0.0
        %782 = vmatpush.msra.mxu0 0.0
        %783 = vmatpush.msra.mxu0 0.0
        %784 = vmatpush.msra.mxu0 %v756
        %785 = vmatpush.msra.mxu0 %v755
        %786 = vmatmul.f32.gmra.mxu0 %v765
        %v787 = vpop.f32.mrf.mxu0
        %v788 = vadd.f32 0.0, %v787
        %789 = vmatmul.f32.gmra.mxu0 %v768
        %v790 = vpop.f32.mrf.mxu0
        %v791 = vadd.f32 0.0, %v790
        %792 = vdwg.mxu0
        %v794 = vsel %vm763, %v761, 0
        %v797 = vsel %vm763, %v762, 0
        %799 = vmatpush.msra.mxu0 0.0
        %800 = vmatpush.msra.mxu0 0.0
        %801 = vmatpush.msra.mxu0 0.0
        %802 = vmatpush.msra.mxu0 0.0
        %803 = vmatpush.msra.mxu0 0.0
        %804 = vmatpush.msra.mxu0 0.0
        %805 = vmatpush.msra.mxu0 0.0
        %806 = vmatpush.msra.mxu0 0.0
        %807 = vmatpush.msra.mxu0 0.0
        %808 = vmatpush.msra.mxu0 0.0
        %809 = vmatpush.msra.mxu0 0.0
        %810 = vmatpush.msra.mxu0 0.0
        %811 = vmatpush.msra.mxu0 0.0
        %812 = vmatpush.msra.mxu0 0.0
        %813 = vmatpush.msra.mxu0 %v758
        %814 = vmatpush.msra.mxu0 %v757
        %815 = vmatmul.f32.gmra.mxu0 %v794
        %v816 = vpop.f32.mrf.mxu0
        %v817 = vadd.f32 0.0, %v816
        %818 = vmatmul.f32.gmra.mxu0 %v797
        %v819 = vpop.f32.mrf.mxu0
        %v820 = vadd.f32 0.0, %v819
        %821 = vdwg.mxu0
        %v822 = vld [vmem:[%s692] sm:$0xff]
        %v823 = vld [vmem:[%s692 + $0x8] sm:$0xff]
        %v824 = vld [vmem:[%s692 + $0x10] sm:$0xff]
        %v825 = vld [vmem:[%s692 + $0x18] sm:$0xff]
        %v826 = vld [vmem:[%s692 + $0x20] sm:$0xff]
        %v827 = vld [vmem:[%s692 + $0x28] sm:$0xff]
        %v828 = vld [vmem:[%s692 + $0x30] sm:$0xff]
        %v829 = vld [vmem:[%s692 + $0x38] sm:$0xff]
        %v830 = vld [vmem:[%s671] sm:$0xff]
        %v831 = vld [vmem:[%s671 + $0x8] sm:$0xff]
        %v832 = vld [vmem:[%s671 + $0x10] sm:$0xff]
        %v833 = vld [vmem:[%s671 + $0x18] sm:$0xff]
        %835 = vset.pattern.permute.xlu0 0
        %836 = vperm.xlu0 %835, %v830
        %v837 = vpop.permute.xlu0 %836
        %840 = vset.pattern.permute.xlu0 0
        %841 = vperm.xlu0 %840, %v831
        %v842 = vpop.permute.xlu0 %841
        %845 = vset.pattern.permute.xlu0 0
        %846 = vperm.xlu0 %845, %v832
        %v847 = vpop.permute.xlu0 %846
        %850 = vset.pattern.permute.xlu0 0
        %851 = vperm.xlu0 %850, %v833
        %v852 = vpop.permute.xlu0 %851
        %vm854 = vcmask 261120
        %v856 = vsel %vm854, %v788, 0
        %v859 = vsel %vm854, %v791, 0
        %861 = vmatpush.msra.mxu0 0.0
        %862 = vmatpush.msra.mxu0 0.0
        %863 = vmatpush.msra.mxu0 0.0
        %864 = vmatpush.msra.mxu0 0.0
        %865 = vmatpush.msra.mxu0 0.0
        %866 = vmatpush.msra.mxu0 0.0
        %867 = vmatpush.msra.mxu0 0.0
        %868 = vmatpush.msra.mxu0 0.0
        %869 = vmatpush.msra.mxu0 0.0
        %870 = vmatpush.msra.mxu0 0.0
        %871 = vmatpush.msra.mxu0 0.0
        %872 = vmatpush.msra.mxu0 0.0
        %873 = vmatpush.msra.mxu0 %v825
        %874 = vmatpush.msra.mxu0 %v824
        %875 = vmatpush.msra.mxu0 %v823
        %876 = vmatpush.msra.mxu0 %v822
        %877 = vmatmul.f32.gmra.mxu0 %v856
        %v878 = vpop.f32.mrf.mxu0
        %v879 = vadd.f32 %v837, %v878
        %880 = vmatmul.f32.gmra.mxu0 %v859
        %v881 = vpop.f32.mrf.mxu0
        %v882 = vadd.f32 %v842, %v881
        %883 = vdwg.mxu0
        %v885 = vsel %vm854, %v817, 0
        %v888 = vsel %vm854, %v820, 0
        %890 = vmatpush.msra.mxu0 0.0
        %891 = vmatpush.msra.mxu0 0.0
        %892 = vmatpush.msra.mxu0 0.0
        %893 = vmatpush.msra.mxu0 0.0
        %894 = vmatpush.msra.mxu0 0.0
        %895 = vmatpush.msra.mxu0 0.0
        %896 = vmatpush.msra.mxu0 0.0
        %897 = vmatpush.msra.mxu0 0.0
        %898 = vmatpush.msra.mxu0 0.0
        %899 = vmatpush.msra.mxu0 0.0
        %900 = vmatpush.msra.mxu0 0.0
        %901 = vmatpush.msra.mxu0 0.0
        %902 = vmatpush.msra.mxu0 %v829
        %903 = vmatpush.msra.mxu0 %v828
        %904 = vmatpush.msra.mxu0 %v827
        %905 = vmatpush.msra.mxu0 %v826
        %906 = vmatmul.f32.gmra.mxu0 %v885
        %v907 = vpop.f32.mrf.mxu0
        %v908 = vadd.f32 %v847, %v907
        %909 = vmatmul.f32.gmra.mxu0 %v888
        %v910 = vpop.f32.mrf.mxu0
        %v911 = vadd.f32 %v852, %v910
        %912 = vdwg.mxu0
        %s913 = vtos %v715
        %v914 = vstv %s913
        %s916 = vtos %v716
        %v917 = vstv %s916
        %v919 = vmul.f32 %v914, %v879
        %v920 = vmul.f32 %v914, %v882
        %v921 = vmul.f32 %v917, %v908
        %v922 = vmul.f32 %v917, %v911
        %v923 = vmul.f32 %v919, 0.001953125
        %v924 = vmul.f32 %v920, 0.001953125
        %v925 = vmul.f32 %v921, 0.001953125
        %v926 = vmul.f32 %v922, 0.001953125
        %v927 = vsub.f32 %v717, %v923
        %v928 = vsub.f32 %v718, %v924
        %v929 = vsub.f32 %v719, %v925
        %v930 = vsub.f32 %v720, %v926
        %v931 = vld [vmem:[%s678] sm:$0xff]
        %v932 = vld [vmem:[%s678 + $0x8] sm:$0xff]
        %v933 = vld [vmem:[%s678 + $0x10] sm:$0xff]
        %v934 = vld [vmem:[%s678 + $0x18] sm:$0xff]
        %v935 = vld [vmem:[%s685] sm:$0xff]
        %v936 = vld [vmem:[%s685 + $0x8] sm:$0xff]
        %v937 = vld [vmem:[%s685 + $0x10] sm:$0xff]
        %v938 = vld [vmem:[%s685 + $0x18] sm:$0xff]
        %940 = vset.pattern.permute.xlu0 0
        %941 = vperm.xlu0 %940, %v931
        %v942 = vpop.permute.xlu0 %941
        %945 = vset.pattern.permute.xlu0 0
        %946 = vperm.xlu0 %945, %v932
        %v947 = vpop.permute.xlu0 %946
        %950 = vset.pattern.permute.xlu0 0
        %951 = vperm.xlu0 %950, %v933
        %v952 = vpop.permute.xlu0 %951
        %955 = vset.pattern.permute.xlu0 0
        %956 = vperm.xlu0 %955, %v934
        %v957 = vpop.permute.xlu0 %956
        %v959 = vmax.f32 %v942, %v927
        %v960 = vmax.f32 %v947, %v928
        %v961 = vmax.f32 %v952, %v929
        %v962 = vmax.f32 %v957, %v930
        %964 = vset.pattern.permute.xlu0 0
        %965 = vperm.xlu0 %964, %v935
        %v966 = vpop.permute.xlu0 %965
        %969 = vset.pattern.permute.xlu0 0
        %970 = vperm.xlu0 %969, %v936
        %v971 = vpop.permute.xlu0 %970
        %974 = vset.pattern.permute.xlu0 0
        %975 = vperm.xlu0 %974, %v937
        %v976 = vpop.permute.xlu0 %975
        %979 = vset.pattern.permute.xlu0 0
        %980 = vperm.xlu0 %979, %v938
        %v981 = vpop.permute.xlu0 %980
        %v983 = vmin.f32 %v966, %v959
        %v984 = vmin.f32 %v971, %v960
        %v985 = vmin.f32 %v976, %v961
        %v986 = vmin.f32 %v981, %v962
        %v987 = vmul.f32 %v746, %v983
        %v988 = vmul.f32 %v746, %v984
        %v989 = vmul.f32 %v749, %v985
        %v990 = vmul.f32 %v749, %v986
        %v991 = vadd.f32 %v737, %v987
        %v992 = vadd.f32 %v738, %v988
        %v993 = vadd.f32 %v739, %v989
        %v994 = vadd.f32 %v740, %v990
        %995 = vst.msk [vmem:[%s706] sm:$0xff] %vm854, %v983
        %996 = vst.msk [vmem:[%s706 + $0x8] sm:$0xff] %vm854, %v984
        %997 = vst.msk [vmem:[%s706 + $0x10] sm:$0xff] %vm854, %v985
        %998 = vst.msk [vmem:[%s706 + $0x18] sm:$0xff] %vm854, %v986
        %999 = vst.msk [vmem:[%s619] sm:$0xff] %vm854, %v991
        %1000 = vst.msk [vmem:[%s619 + $0x8] sm:$0xff] %vm854, %v992
        %1001 = vst.msk [vmem:[%s619 + $0x10] sm:$0xff] %vm854, %v993
        %1002 = vst.msk [vmem:[%s619 + $0x18] sm:$0xff] %vm854, %v994
        %v1003 = vsub.f32 %v983, %v717
        %v1004 = vsub.f32 %v984, %v718
        %v1005 = vsub.f32 %v985, %v719
        %v1006 = vsub.f32 %v986, %v720
        %v1007 = vrot.slane %v715, 3
        %v1008 = vrot.slane %v716, 3
        %s1009 = vtos %v1007
        %v1010 = vstv %s1009
        %s1012 = vtos %v1008
        %v1013 = vstv %s1012
        %v1015 = vmul.f32 %v1010, %v1003
        %v1016 = vmul.f32 %v1010, %v1004
        %v1017 = vmul.f32 %v1013, %v1005
        %v1018 = vmul.f32 %v1013, %v1006
        %v1019 = vadd.f32 %v1015, %v983
        %v1020 = vadd.f32 %v1016, %v984
        %v1021 = vadd.f32 %v1017, %v985
        %v1022 = vadd.f32 %v1018, %v986
        %v1023 = vld [vmem:[%s664] sm:$0xff]
        %v1024 = vld [vmem:[%s664 + $0x8] sm:$0xff]
        %v1026 = vsel %vm763, %v1023, 0
        %1028 = vmatpush.msra.mxu0 0.0
        %1029 = vmatpush.msra.mxu0 0.0
        %1030 = vmatpush.msra.mxu0 0.0
        %1031 = vmatpush.msra.mxu0 0.0
        %1032 = vmatpush.msra.mxu0 0.0
        %1033 = vmatpush.msra.mxu0 0.0
        %1034 = vmatpush.msra.mxu0 0.0
        %1035 = vmatpush.msra.mxu0 0.0
        %1036 = vmatpush.msra.mxu0 0.0
        %1037 = vmatpush.msra.mxu0 0.0
        %1038 = vmatpush.msra.mxu0 0.0
        %1039 = vmatpush.msra.mxu0 0.0
        %1040 = vmatpush.msra.mxu0 0.0
        %1041 = vmatpush.msra.mxu0 0.0
        %1042 = vmatpush.msra.mxu0 %v1020
        %1043 = vmatpush.msra.mxu0 %v1019
        %1044 = vmatmul.f32.gmra.mxu0 %v1026
        %v1045 = vpop.f32.mrf.mxu0
        %v1046 = vadd.f32 0.0, %v1045
        %1047 = vdwg.mxu0
        %v1049 = vsel %vm763, %v1024, 0
        %1051 = vmatpush.msra.mxu0 0.0
        %1052 = vmatpush.msra.mxu0 0.0
        %1053 = vmatpush.msra.mxu0 0.0
        %1054 = vmatpush.msra.mxu0 0.0
        %1055 = vmatpush.msra.mxu0 0.0
        %1056 = vmatpush.msra.mxu0 0.0
        %1057 = vmatpush.msra.mxu0 0.0
        %1058 = vmatpush.msra.mxu0 0.0
        %1059 = vmatpush.msra.mxu0 0.0
        %1060 = vmatpush.msra.mxu0 0.0
        %1061 = vmatpush.msra.mxu0 0.0
        %1062 = vmatpush.msra.mxu0 0.0
        %1063 = vmatpush.msra.mxu0 0.0
        %1064 = vmatpush.msra.mxu0 0.0
        %1065 = vmatpush.msra.mxu0 %v1022
        %1066 = vmatpush.msra.mxu0 %v1021
        %1067 = vmatmul.f32.gmra.mxu0 %v1049
        %v1068 = vpop.f32.mrf.mxu0
        %v1069 = vadd.f32 0.0, %v1068
        %1070 = vdwg.mxu0
        %v1071 = vld [vmem:[%s699] sm:$0xff]
        %v1072 = vld [vmem:[%s699 + $0x8] sm:$0xff]
        %v1073 = vld [vmem:[%s699 + $0x10] sm:$0xff]
        %v1074 = vld [vmem:[%s699 + $0x18] sm:$0xff]
        %v1075 = vld [vmem:[%s699 + $0x20] sm:$0xff]
        %v1076 = vld [vmem:[%s699 + $0x28] sm:$0xff]
        %v1077 = vld [vmem:[%s699 + $0x30] sm:$0xff]
        %v1078 = vld [vmem:[%s699 + $0x38] sm:$0xff]
        %v1080 = vsel %vm854, %v1046, 0
        %1082 = vmatpush.msra.mxu0 0.0
        %1083 = vmatpush.msra.mxu0 0.0
        %1084 = vmatpush.msra.mxu0 0.0
        %1085 = vmatpush.msra.mxu0 0.0
        %1086 = vmatpush.msra.mxu0 0.0
        %1087 = vmatpush.msra.mxu0 0.0
        %1088 = vmatpush.msra.mxu0 0.0
        %1089 = vmatpush.msra.mxu0 0.0
        %1090 = vmatpush.msra.mxu0 0.0
        %1091 = vmatpush.msra.mxu0 0.0
        %1092 = vmatpush.msra.mxu0 0.0
        %1093 = vmatpush.msra.mxu0 0.0
        %1094 = vmatpush.msra.mxu0 %v1074
        %1095 = vmatpush.msra.mxu0 %v1073
        %1096 = vmatpush.msra.mxu0 %v1072
        %1097 = vmatpush.msra.mxu0 %v1071
        %1098 = vmatmul.f32.gmra.mxu0 %v1080
        %v1099 = vpop.f32.mrf.mxu0
        %v1100 = vadd.f32 0.0, %v1099
        %1101 = vdwg.mxu0
        %v1103 = vsel %vm854, %v1069, 0
        %1105 = vmatpush.msra.mxu0 0.0
        %1106 = vmatpush.msra.mxu0 0.0
        %1107 = vmatpush.msra.mxu0 0.0
        %1108 = vmatpush.msra.mxu0 0.0
        %1109 = vmatpush.msra.mxu0 0.0
        %1110 = vmatpush.msra.mxu0 0.0
        %1111 = vmatpush.msra.mxu0 0.0
        %1112 = vmatpush.msra.mxu0 0.0
        %1113 = vmatpush.msra.mxu0 0.0
        %1114 = vmatpush.msra.mxu0 0.0
        %1115 = vmatpush.msra.mxu0 0.0
        %1116 = vmatpush.msra.mxu0 0.0
        %1117 = vmatpush.msra.mxu0 %v1078
        %1118 = vmatpush.msra.mxu0 %v1077
        %1119 = vmatpush.msra.mxu0 %v1076
        %1120 = vmatpush.msra.mxu0 %v1075
        %1121 = vmatmul.f32.gmra.mxu0 %v1103
        %v1122 = vpop.f32.mrf.mxu0
        %v1123 = vadd.f32 0.0, %v1122
        %1124 = vdwg.mxu0
        %v1125 = vld [vmem:[%s651] sm:$0xff]
        %v1126 = vld [vmem:[%s651 + $0x8] sm:$0xff]
        %v1127 = vrot.slane %v715, 2
        %v1128 = vrot.slane %v716, 2
        %s1129 = vtos %v1127
        %v1130 = vstv %s1129
        %s1132 = vtos %v1128
        %v1133 = vstv %s1132
        %v1135 = vmul.f32 %v1130, %v1100
        %v1136 = vmul.f32 %v1133, %v1123
        %v1137 = vsub.f32 %v1125, %v1135
        %v1138 = vsub.f32 %v1126, %v1136
        %v1139 = vmax.f32 %v1137, 0.0
        %v1140 = vmax.f32 %v1138, 0.0
        %1141 = vst.msk [vmem:[%s713] sm:$0xff] %vm854, %v1139
        %1142 = vst.msk [vmem:[%s713 + $0x8] sm:$0xff] %vm854, %v1140
        %s1143 = smul.u32 2, %s28
        %p1144 = scmp.lt.s32.totalorder %s1143, 3
        %s1145 = scalar_select %p1144, %s1143, 3
        %s1146 = smul.addr %s1145, 2
        %s1147 = smul.addr %s1146, 8
        %s1148 = scalar_lea.vmem %s11, %s1147
        %s1149 = sand.u32 %s348, 1
        %s1150 = scalar_lea.sflag [#allocation3], %s1149
        %s1151 = sand.u32 %s348, 1
        %s1152 = smul.addr %s1151, 32
        %s1153 = scalar_lea.vmem [#allocation2], %s1152
        %s1154 = smul.u32 2, %s28
        %p1155 = scmp.lt.s32.totalorder %s1154, 3
        %s1156 = scalar_select %p1155, %s1154, 3
        %s1157 = smul.addr %s1156, 8
        %s1158 = scalar_lea.vmem %s13, %s1157
        // Predicated region
        $region65: #{pdqp_net_forward.3} parent=63 // pred_check
          %p1159 = pneg %p332
        $region66: #{pdqp_net_forward.3} parent=63 // pred_check_branch
          %1161 = sbr.rel (%p1159) target = $region68
        $region67: #{pdqp_net_forward.3} parent=63 // pred_region
          %s1162 = smul.u32 2, %s28
        $region68: #{pdqp_net_forward.3} parent=63 // pred_fallthru
          _
        // Predicated region
        $region69: #{pdqp_net_forward.3} parent=63 // pred_check
          %p1163 = pneg %p358
        $region70: #{pdqp_net_forward.3} parent=63 // pred_check_branch
          %1165 = sbr.rel (%p1163) target = $region72
        $region71: #{pdqp_net_forward.3} parent=63 // pred_region
          %s1166 = smul.u32 2, %s28
          %1168 = vsyncadd %s1150, 0
          %s1169 = smul.addr %s1166, 2
          %s1170 = smul.addr %s1169, 8
          %s1171 = scalar_lea.hbm %s12, %s1170
          %s1172 = sshll.u32 %s1153, 4
          %s1173 = int_to_ptr.vmem [resolvable:$true] %s1172
          %s1174 = sshll.u32 %s1171, 4
          %s1175 = int_to_ptr.hbm [resolvable:$true] %s1174
          %1180 = dma.vmem_to_hbm [thread:$0]  %s1173, 512, %s1175, %s1150, 128, 128, 8
        $region72: #{pdqp_net_forward.3} parent=63 // pred_fallthru
          _
        // Predicated region
        $region73: #{pdqp_net_forward.3} parent=63 // pred_check
          %p1181 = pneg %p384
        $region74: #{pdqp_net_forward.3} parent=63 // pred_check_branch
          %1183 = sbr.rel (%p1181) target = $region76
        $region75: #{pdqp_net_forward.3} parent=63 // pred_region
          %s1184 = smul.u32 2, %s28
        $region76: #{pdqp_net_forward.3} parent=63 // pred_fallthru
          _
      $region64: #{pdqp_net_forward.3} parent=5 // pred_fallthru
        _
      %p1185 = scmp.le.s32.totalorder 2, %s23
      // Predicated region
      $region77: #{pdqp_net_forward.3} parent=5 // pred_check
        %p1186 = pneg %p1185
      $region78: #{pdqp_net_forward.3} parent=5 // pred_check_branch
        %1188 = sbr.rel (%p1186) target = $region80
      $region79: #{pdqp_net_forward.3} parent=5 // pred_region
        %s1189 = ssub.s32 %s23, 2
        // Predicated region
        $region81: #{pdqp_net_forward.3} parent=79 // pred_check
          %p1190 = pneg %p338
        $region82: #{pdqp_net_forward.3} parent=79 // pred_check_branch
          %1192 = sbr.rel (%p1190) target = $region84
        $region83: #{pdqp_net_forward.3} parent=79 // pred_region
          %s1193 = smul.u32 2, %s29
          %p1194 = scmp.lt.s32.totalorder %s1193, 3
          %s1195 = scalar_select %p1194, %s1193, 3
          %s1196 = smul.addr %s1195, 2
          %s1197 = smul.addr %s1196, 8
          %s1198 = scalar_lea.vmem %s11, %s1197
        $region84: #{pdqp_net_forward.3} parent=79 // pred_fallthru
          _
        // Predicated region
        $region85: #{pdqp_net_forward.3} parent=79 // pred_check
          %p1199 = pneg %p364
        $region86: #{pdqp_net_forward.3} parent=79 // pred_check_branch
          %1201 = sbr.rel (%p1199) target = $region88
        $region87: #{pdqp_net_forward.3} parent=79 // pred_region
          %s1202 = sand.u32 %s349, 1
          %s1203 = scalar_lea.sflag [#allocation3], %s1202
          %s1204 = sand.u32 %s349, 1
          %s1205 = smul.addr %s1204, 32
          %s1206 = scalar_lea.vmem [#allocation2], %s1205
          %1208 = dma.done %s1203, 512
        $region88: #{pdqp_net_forward.3} parent=79 // pred_fallthru
          _
        // Predicated region
        $region89: #{pdqp_net_forward.3} parent=79 // pred_check
          %p1209 = pneg %p390
        $region90: #{pdqp_net_forward.3} parent=79 // pred_check_branch
          %1211 = sbr.rel (%p1209) target = $region92
        $region91: #{pdqp_net_forward.3} parent=79 // pred_region
          %s1212 = smul.u32 2, %s29
          %p1213 = scmp.lt.s32.totalorder %s1212, 3
          %s1214 = scalar_select %p1213, %s1212, 3
          %s1215 = smul.addr %s1214, 8
          %s1216 = scalar_lea.vmem %s13, %s1215
        $region92: #{pdqp_net_forward.3} parent=79 // pred_fallthru
          _
      $region80: #{pdqp_net_forward.3} parent=5 // pred_fallthru
        _
    $region6: #{pdqp_net_forward.3} parent=1 // loop_footer
      %s27 = sadd.s32 1, %s23
    $region7: #{pdqp_net_forward.3} parent=1 // loop_footer_branch
      %22 = sbr.rel target = $region3
    $region8: #{pdqp_net_forward.3} parent=1 // loop_exit
      _
    %1217 = vsyncpa [#allocation3], 1
    %s1218 = scalar_lea.sflag [#allocation3], 1
    %1219 = vsyncpa %s1218, 1

</llo_original>
